<compile_context>
chip_gen: v6e
topology: v6e:2x2x1
jax: 0.10.0
libtpu: 0.0.40
codegen_flags: <defaults>
</compile_context>

<pallas_src>
import functools
import math

import jax
import jax.numpy as jnp
from jax.experimental import pallas as pl
from jax.experimental.pallas import tpu as pltpu


# ----------------------------- kernel helpers ------------------------------

def _layernorm(x, scale, shift, eps=1e-5):
    # mean / biased variance over last axis (matches torch unbiased=False)
    mean = jnp.mean(x, axis=-1, keepdims=True)
    var = jnp.mean(jnp.square(x - mean), axis=-1, keepdims=True)
    return scale * ((x - mean) * jax.lax.rsqrt(var + eps)) + shift   # rsqrt -> EUP


_GELU_C = math.sqrt(2.0 / math.pi)


def _gelu_tanh(x):
    return 0.5 * x * (1.0 + jnp.tanh(_GELU_C * (x + 0.044715 * x * x * x)))


# -------------------------------- kernel -----------------------------------

def transformer_block_kernel(num_heads,
                             x_ref,
                             wqkv_ref, wo_ref, bo_ref,
                             n1s_ref, n1b_ref,
                             w1_ref, b1_ref, w2_ref, b2_ref,
                             n2s_ref, n2b_ref,
                             out_ref):
    x = x_ref[...]                               # (T, D) f32 -- one batch element
    rows, D = x.shape
    head_dim = D // num_heads
    scale = 1.0 / math.sqrt(head_dim)

    # ---- norm1 + fused QKV projection (one (T,D) @ (D,3D) bf16 matmul) -----
    h = _layernorm(x, n1s_ref[...], n1b_ref[...])
    qkv = jnp.dot(h.astype(jnp.bfloat16), wqkv_ref[...],
                  preferred_element_type=jnp.float32)               # (T, 3D) f32

    # cast ONCE to bf16; fold 1/sqrt(hd) into q before the scores matmul
    q = (qkv[:, :D] * scale).astype(jnp.bfloat16)
    k = qkv[:, D:2 * D].astype(jnp.bfloat16)
    v = qkv[:, 2 * D:].astype(jnp.bfloat16)

    # ---- causal mask computed in-kernel (no DMA'd (BT,BT) array) -----------
    row_ids = jax.lax.broadcasted_iota(jnp.int32, (rows, rows), 0)
    col_ids = jax.lax.broadcasted_iota(jnp.int32, (rows, rows), 1)
    mask_bias = jnp.where(col_ids <= row_ids, 0.0, -1e30).astype(jnp.float32)

    # ---- causal multi-head attention --------------------------------------
    ctx_heads = []
    for hh in range(num_heads):                  # static unroll (num_heads small)
        lo = hh * head_dim
        hi = lo + head_dim
        s = jnp.einsum('td,sd->ts', q[:, lo:hi], k[:, lo:hi],
                       preferred_element_type=jnp.float32)          # bf16 ops, f32 acc
        s = s + mask_bias
        s = s - jnp.max(s, axis=-1, keepdims=True)
        e = jnp.exp(s)
        p = e * pl.reciprocal(jnp.sum(e, axis=-1, keepdims=True), approx=True)
        ctx = jnp.dot(p.astype(jnp.bfloat16), v[:, lo:hi],
                      preferred_element_type=jnp.float32)           # (T, hd)
        ctx_heads.append(ctx.astype(jnp.bfloat16))

    # single K = D output projection (MXU-depth friendly)
    ctx_all = jnp.concatenate(ctx_heads, axis=-1)                   # (T, D) bf16
    attn = jnp.dot(ctx_all, wo_ref[...],
                   preferred_element_type=jnp.float32) + bo_ref[...]

    x1 = x + attn                                # residual 1 (dropout p=0 -> identity)

    # ---- norm2 + feed-forward (Linear -> GELU -> Linear) + residual --------
    h2 = _layernorm(x1, n2s_ref[...], n2b_ref[...])
    g = jnp.dot(h2.astype(jnp.bfloat16), w1_ref[...],
                preferred_element_type=jnp.float32) + b1_ref[...]
    g = _gelu_tanh(g)
    ff = jnp.dot(g.astype(jnp.bfloat16), w2_ref[...],
                 preferred_element_type=jnp.float32) + b2_ref[...]
    out_ref[...] = (x1 + ff).astype(out_ref.dtype)                  # residual 2


# ------------------------------- wrapper ------------------------------------

def prepare_params(params):
    """One-time weight prep (QKV fusion + bf16 casts) hoisted out of the call path."""
    (wq, wk, wv, wo, bo, n1s, n1b, w1, b1, w2, b2, n2s, n2b) = params
    wqkv = jnp.concatenate([wq, wk, wv], axis=1).astype(jnp.bfloat16)   # (D, 3D)
    return (wqkv, wo.astype(jnp.bfloat16), bo, n1s, n1b,
            w1.astype(jnp.bfloat16), b1, w2.astype(jnp.bfloat16), b2, n2s, n2b)


def transformer_block(x, prepared, num_heads):
    B, T, D = x.shape
    H4 = 4 * D
    (wqkv, wo, bo, n1s, n1b, w1, b1, w2, b2, n2s, n2b) = prepared

    x2d = x.reshape(B * T, D)
    kernel = functools.partial(transformer_block_kernel, num_heads)

    def const_spec(shape):
        zeros = (0,) * len(shape)
        return pl.BlockSpec(shape, lambda i: zeros)      # resident weights

    # row tile = one batch element; pipelined + sharded across TCs (v7x megacore)
    row_spec = pl.BlockSpec((T, D), lambda i: (i, 0))

    flops = 2 * B * T * D * (12 * D + 2 * T)                      # qkv+attn+proj+ff
    transcendentals = B * (num_heads * T * T + 4 * T * D)         # softmax exp + gelu
    bytes_accessed = (2 * B * T * D * 4                           # x in + out (f32)
                      + (3 * D * D + D * D + 8 * D * D) * 2       # bf16 matmul weights
                      + 12 * D * 4)                               # biases / norm params

    out2d = pl.pallas_call(
        kernel,
        out_shape=jax.ShapeDtypeStruct((B * T, D), x.dtype),
        grid=(B,),
        in_specs=[
            row_spec,                          # x rows (one batch element / step)
            const_spec((D, 3 * D)),            # fused Wqkv (bf16)
            const_spec((D, D)), const_spec((1, D)),     # Wo (bf16), bo
            const_spec((1, D)), const_spec((1, D)),     # norm1 scale/shift
            const_spec((D, H4)), const_spec((1, H4)),   # ff W1 (bf16), b1
            const_spec((H4, D)), const_spec((1, D)),    # ff W2 (bf16), b2
            const_spec((1, D)), const_spec((1, D)),     # norm2 scale/shift
        ],
        out_specs=row_spec,
        compiler_params=pltpu.CompilerParams(
            dimension_semantics=("parallel",),
            # small budget is plenty here; re-derive per generation when tiling
            # for real sizes (v7x: 64 MiB physical, v6e/v5e: 128 MiB)
            vmem_limit_bytes=32 * 1024 * 1024,
        ),
        cost_estimate=pl.CostEstimate(
            flops=flops,
            transcendentals=transcendentals,
            bytes_accessed=bytes_accessed,
        ),
    )(x2d, wqkv, wo, bo, n1s, n1b, w1, b1, w2, b2, n2s, n2b)

    return out2d.reshape(B, T, D)


# --------------------------- pure-JAX reference ------------------------------

def transformer_block_ref(x, params, num_heads):
    (wq, wk, wv, wo, bo, n1s, n1b, w1, b1, w2, b2, n2s, n2b) = params
    B, T, D = x.shape
    hd = D // num_heads

    def ln(z, s, b):
        m = jnp.mean(z, -1, keepdims=True)
        v = jnp.mean((z - m) ** 2, -1, keepdims=True)
        return s * ((z - m) / jnp.sqrt(v + 1e-5)) + b

    h = ln(x, n1s, n1b)
    q = (h @ wq).reshape(B, T, num_heads, hd).transpose(0, 2, 1, 3)
    k = (h @ wk).reshape(B, T, num_heads, hd).transpose(0, 2, 1, 3)
    v = (h @ wv).reshape(B, T, num_heads, hd).transpose(0, 2, 1, 3)
    scores = jnp.einsum('bhqd,bhkd->bhqk', q, k) / jnp.sqrt(jnp.float32(hd))
    mask = jnp.triu(jnp.ones((T, T), bool), k=1)
    scores = jnp.where(mask, -jnp.inf, scores)
    w = jax.nn.softmax(scores, axis=-1)
    ctx = jnp.einsum('bhqk,bhkd->bhqd', w, v).transpose(0, 2, 1, 3).reshape(B, T, D)
    attn = ctx @ wo + bo
    x1 = x + attn
    h2 = ln(x1, n2s, n2b)
    g = h2 @ w1 + b1
    g = 0.5 * g * (1 + jnp.tanh(jnp.sqrt(2.0 / jnp.pi) * (g + 0.044715 * g ** 3)))
    return x1 + (g @ w2 + b2)


# --------------------------------- main --------------------------------------

if __name__ == "__main__":
    # cfg: emb_dim=32, context_length=8, n_heads=4, drop_rate=0.0, qkv_bias=False
    B, T, D, n_heads = 2, 8, 32, 4
    H4 = 4 * D

    key = jax.random.PRNGKey(0)
    keys = jax.random.split(key, 8)

    x = jax.random.normal(keys[0], (B, T, D), dtype=jnp.float32)

    params = (
        0.02 * jax.random.normal(keys[1], (D, D), jnp.float32),     # W_query (in,out)
        0.02 * jax.random.normal(keys[2], (D, D), jnp.float32),     # W_key
        0.02 * jax.random.normal(keys[3], (D, D), jnp.float32),     # W_value
        0.02 * jax.random.normal(keys[4], (D, D), jnp.float32),     # out_proj W
        jnp.zeros((1, D), jnp.float32),                             # out_proj b
        jnp.ones((1, D), jnp.float32),                              # norm1 scale
        jnp.zeros((1, D), jnp.float32),                             # norm1 shift
        0.02 * jax.random.normal(keys[5], (D, H4), jnp.float32),    # ff W1
        jnp.zeros((1, H4), jnp.float32),                            # ff b1
        0.02 * jax.random.normal(keys[6], (H4, D), jnp.float32),    # ff W2
        jnp.zeros((1, D), jnp.float32),                             # ff b2
        jnp.ones((1, D), jnp.float32),                              # norm2 scale
        jnp.zeros((1, D), jnp.float32),                             # norm2 shift
    )

    prepared = prepare_params(params)            # one-time weight fusion / casts
    out = transformer_block(x, prepared, n_heads)
    out = jax.block_until_ready(out)

    ref = transformer_block_ref(x, params, n_heads)
    assert out.shape == (B, T, D)
    # bf16 matmul operands + approx reciprocal -> compare with bf16-level tolerance
    assert jnp.allclose(out, ref, rtol=1e-2, atol=1e-2), "mismatch vs reference"

    print("KERNEL_OK")
</pallas_src>

<mosaic_0001>
module attributes {stable_mosaic.version = 11 : i64} {
  func.func @transformer_block_kernel(%arg0: i32, %arg1: memref<8x32xf32, #tpu.memory_space<vmem>>, %arg2: memref<32x96xbf16, #tpu.memory_space<vmem>>, %arg3: memref<32x32xbf16, #tpu.memory_space<vmem>>, %arg4: memref<1x32xf32, #tpu.memory_space<vmem>>, %arg5: memref<1x32xf32, #tpu.memory_space<vmem>>, %arg6: memref<1x32xf32, #tpu.memory_space<vmem>>, %arg7: memref<32x128xbf16, #tpu.memory_space<vmem>>, %arg8: memref<1x128xf32, #tpu.memory_space<vmem>>, %arg9: memref<128x32xbf16, #tpu.memory_space<vmem>>, %arg10: memref<1x32xf32, #tpu.memory_space<vmem>>, %arg11: memref<1x32xf32, #tpu.memory_space<vmem>>, %arg12: memref<1x32xf32, #tpu.memory_space<vmem>>, %arg13: memref<8x32xf32, #tpu.memory_space<vmem>>) attributes {dimension_semantics = [#tpu.dimension_semantics<parallel>], iteration_bounds = array<i64: 2>, scalar_prefetch = 0 : i64, scratch_operands = 0 : i64, tpu.core_type = #tpu.core_type<tc>, window_params = [{transform_indices = @transform_0, window_bounds = array<i64: 8, 32>}, {pipeline_mode = #tpu.pipeline_mode<synchronous>, transform_indices = @transform_1, window_bounds = array<i64: 32, 96>}, {pipeline_mode = #tpu.pipeline_mode<synchronous>, transform_indices = @transform_2, window_bounds = array<i64: 32, 32>}, {pipeline_mode = #tpu.pipeline_mode<synchronous>, transform_indices = @transform_3, window_bounds = array<i64: 1, 32>}, {pipeline_mode = #tpu.pipeline_mode<synchronous>, transform_indices = @transform_4, window_bounds = array<i64: 1, 32>}, {pipeline_mode = #tpu.pipeline_mode<synchronous>, transform_indices = @transform_5, window_bounds = array<i64: 1, 32>}, {pipeline_mode = #tpu.pipeline_mode<synchronous>, transform_indices = @transform_6, window_bounds = array<i64: 32, 128>}, {pipeline_mode = #tpu.pipeline_mode<synchronous>, transform_indices = @transform_7, window_bounds = array<i64: 1, 128>}, {pipeline_mode = #tpu.pipeline_mode<synchronous>, transform_indices = @transform_8, window_bounds = array<i64: 128, 32>}, {pipeline_mode = #tpu.pipeline_mode<synchronous>, transform_indices = @transform_9, window_bounds = array<i64: 1, 32>}, {pipeline_mode = #tpu.pipeline_mode<synchronous>, transform_indices = @transform_10, window_bounds = array<i64: 1, 32>}, {pipeline_mode = #tpu.pipeline_mode<synchronous>, transform_indices = @transform_11, window_bounds = array<i64: 1, 32>}, {transform_indices = @transform_12, window_bounds = array<i64: 8, 32>}]} {
    %c0 = arith.constant 0 : index
    %c0_0 = arith.constant 0 : index
    %0 = vector.load %arg1[%c0, %c0_0] : memref<8x32xf32, #tpu.memory_space<vmem>>, vector<8x32xf32>
    %c0_1 = arith.constant 0 : index
    %c0_2 = arith.constant 0 : index
    %1 = vector.load %arg5[%c0_1, %c0_2] : memref<1x32xf32, #tpu.memory_space<vmem>>, vector<1x32xf32>
    %c0_3 = arith.constant 0 : index
    %c0_4 = arith.constant 0 : index
    %2 = vector.load %arg6[%c0_3, %c0_4] : memref<1x32xf32, #tpu.memory_space<vmem>>, vector<1x32xf32>
    %cst = arith.constant dense<0.000000e+00> : vector<8xf32>
    %3 = vector.multi_reduction <add>, %0, %cst [1] : vector<8x32xf32> to vector<8xf32>
    %4 = vector.shape_cast %3 : vector<8xf32> to vector<8x1xf32>
    %cst_5 = arith.constant 3.200000e+01 : f32
    %5 = vector.broadcast %cst_5 : f32 to vector<8x1xf32>
    %6 = arith.divf %4, %5 : vector<8x1xf32>
    %7 = vector.broadcast %6 : vector<8x1xf32> to vector<8x32xf32>
    %8 = arith.subf %0, %7 : vector<8x32xf32>
    %9 = arith.mulf %8, %8 : vector<8x32xf32>
    %cst_6 = arith.constant dense<0.000000e+00> : vector<8xf32>
    %10 = vector.multi_reduction <add>, %9, %cst_6 [1] : vector<8x32xf32> to vector<8xf32>
    %11 = vector.shape_cast %10 : vector<8xf32> to vector<8x1xf32>
    %cst_7 = arith.constant 3.200000e+01 : f32
    %12 = vector.broadcast %cst_7 : f32 to vector<8x1xf32>
    %13 = arith.divf %11, %12 : vector<8x1xf32>
    %14 = vector.broadcast %6 : vector<8x1xf32> to vector<8x32xf32>
    %15 = arith.subf %0, %14 : vector<8x32xf32>
    %cst_8 = arith.constant 9.99999974E-6 : f32
    %16 = vector.broadcast %cst_8 : f32 to vector<8x1xf32>
    %17 = arith.addf %13, %16 : vector<8x1xf32>
    %18 = math.rsqrt %17 : vector<8x1xf32>
    %19 = vector.broadcast %18 : vector<8x1xf32> to vector<8x32xf32>
    %20 = arith.mulf %15, %19 : vector<8x32xf32>
    %21 = vector.broadcast %1 : vector<1x32xf32> to vector<8x32xf32>
    %22 = arith.mulf %21, %20 : vector<8x32xf32>
    %23 = vector.broadcast %2 : vector<1x32xf32> to vector<8x32xf32>
    %24 = arith.addf %22, %23 : vector<8x32xf32>
    %25 = arith.truncf %24 : vector<8x32xf32> to vector<8x32xbf16>
    %c0_9 = arith.constant 0 : index
    %c0_10 = arith.constant 0 : index
    %26 = vector.load %arg2[%c0_9, %c0_10] : memref<32x96xbf16, #tpu.memory_space<vmem>>, vector<32x96xbf16>
    %cst_11 = arith.constant dense<0.000000e+00> : vector<8x96xf32>
    %27 = tpu.matmul %25, %26, %cst_11 {dimension_numbers = #tpu.dot_dimension_numbers<[1], [0], [0], [1], [0, 0, 1, 1], [], []>} : vector<8x32xbf16>, vector<32x96xbf16>, vector<8x96xf32> -> vector<8x96xf32>
    %28 = vector.extract_strided_slice %27 {offsets = [0, 0], sizes = [8, 32], strides = [1, 1]} : vector<8x96xf32> to vector<8x32xf32>
    %cst_12 = arith.constant 0.353553385 : f32
    %29 = vector.broadcast %cst_12 : f32 to vector<8x32xf32>
    %30 = arith.mulf %28, %29 : vector<8x32xf32>
    %31 = arith.truncf %30 : vector<8x32xf32> to vector<8x32xbf16>
    %32 = vector.extract_strided_slice %27 {offsets = [0, 32], sizes = [8, 32], strides = [1, 1]} : vector<8x96xf32> to vector<8x32xf32>
    %33 = arith.truncf %32 : vector<8x32xf32> to vector<8x32xbf16>
    %34 = vector.extract_strided_slice %27 {offsets = [0, 64], sizes = [8, 32], strides = [1, 1]} : vector<8x96xf32> to vector<8x32xf32>
    %35 = arith.truncf %34 : vector<8x32xf32> to vector<8x32xbf16>
    %36 = tpu.iota {dimensions = array<i32: 0>} : vector<8x8xi32>
    %37 = tpu.iota {dimensions = array<i32: 1>} : vector<8x8xi32>
    %38 = arith.cmpi sle, %37, %36 : vector<8x8xi32>
    %cst_13 = arith.constant 0.000000e+00 : f32
    %cst_14 = arith.constant -1.000000e+30 : f32
    %39 = vector.broadcast %cst_13 : f32 to vector<8x8xf32>
    %40 = vector.broadcast %cst_14 : f32 to vector<8x8xf32>
    %41 = arith.select %38, %39, %40 : vector<8x8xi1>, vector<8x8xf32>
    %42 = vector.extract_strided_slice %31 {offsets = [0, 0], sizes = [8, 8], strides = [1, 1]} : vector<8x32xbf16> to vector<8x8xbf16>
    %43 = vector.extract_strided_slice %33 {offsets = [0, 0], sizes = [8, 8], strides = [1, 1]} : vector<8x32xbf16> to vector<8x8xbf16>
    "tpu.trace_start"() <{level = 10 : i32, message = "td,sd->ts"}> : () -> ()
    %cst_15 = arith.constant dense<0.000000e+00> : vector<8x8xf32>
    %44 = tpu.matmul %42, %43, %cst_15 {dimension_numbers = #tpu.dot_dimension_numbers<[1], [1], [0], [0], [0, 0, 1, 0], [], []>} : vector<8x8xbf16>, vector<8x8xbf16>, vector<8x8xf32> -> vector<8x8xf32>
    "tpu.trace_stop"() : () -> ()
    %45 = arith.addf %44, %41 : vector<8x8xf32>
    %cst_16 = arith.constant dense<0xFF800000> : vector<8xf32>
    %46 = vector.multi_reduction <maximumf>, %45, %cst_16 [1] : vector<8x8xf32> to vector<8xf32>
    %47 = vector.shape_cast %46 : vector<8xf32> to vector<8x1xf32>
    %48 = vector.broadcast %47 : vector<8x1xf32> to vector<8x8xf32>
    %49 = arith.subf %45, %48 : vector<8x8xf32>
    %50 = math.exp %49 : vector<8x8xf32>
    %cst_17 = arith.constant dense<0.000000e+00> : vector<8xf32>
    %51 = vector.multi_reduction <add>, %50, %cst_17 [1] : vector<8x8xf32> to vector<8xf32>
    %52 = vector.shape_cast %51 : vector<8xf32> to vector<8x1xf32>
    %53 = tpu.reciprocal %52 {approx = true} : vector<8x1xf32> -> vector<8x1xf32>
    %54 = vector.broadcast %53 : vector<8x1xf32> to vector<8x8xf32>
    %55 = arith.mulf %50, %54 : vector<8x8xf32>
    %56 = arith.truncf %55 : vector<8x8xf32> to vector<8x8xbf16>
    %57 = vector.extract_strided_slice %35 {offsets = [0, 0], sizes = [8, 8], strides = [1, 1]} : vector<8x32xbf16> to vector<8x8xbf16>
    %cst_18 = arith.constant dense<0.000000e+00> : vector<8x8xf32>
    %58 = tpu.matmul %56, %57, %cst_18 {dimension_numbers = #tpu.dot_dimension_numbers<[1], [0], [0], [1], [0, 0, 1, 1], [], []>} : vector<8x8xbf16>, vector<8x8xbf16>, vector<8x8xf32> -> vector<8x8xf32>
    %59 = arith.truncf %58 : vector<8x8xf32> to vector<8x8xbf16>
    %60 = vector.extract_strided_slice %31 {offsets = [0, 8], sizes = [8, 8], strides = [1, 1]} : vector<8x32xbf16> to vector<8x8xbf16>
    %61 = vector.extract_strided_slice %33 {offsets = [0, 8], sizes = [8, 8], strides = [1, 1]} : vector<8x32xbf16> to vector<8x8xbf16>
    "tpu.trace_start"() <{level = 10 : i32, message = "td,sd->ts"}> : () -> ()
    %cst_19 = arith.constant dense<0.000000e+00> : vector<8x8xf32>
    %62 = tpu.matmul %60, %61, %cst_19 {dimension_numbers = #tpu.dot_dimension_numbers<[1], [1], [0], [0], [0, 0, 1, 0], [], []>} : vector<8x8xbf16>, vector<8x8xbf16>, vector<8x8xf32> -> vector<8x8xf32>
    "tpu.trace_stop"() : () -> ()
    %63 = arith.addf %62, %41 : vector<8x8xf32>
    %cst_20 = arith.constant dense<0xFF800000> : vector<8xf32>
    %64 = vector.multi_reduction <maximumf>, %63, %cst_20 [1] : vector<8x8xf32> to vector<8xf32>
    %65 = vector.shape_cast %64 : vector<8xf32> to vector<8x1xf32>
    %66 = vector.broadcast %65 : vector<8x1xf32> to vector<8x8xf32>
    %67 = arith.subf %63, %66 : vector<8x8xf32>
    %68 = math.exp %67 : vector<8x8xf32>
    %cst_21 = arith.constant dense<0.000000e+00> : vector<8xf32>
    %69 = vector.multi_reduction <add>, %68, %cst_21 [1] : vector<8x8xf32> to vector<8xf32>
    %70 = vector.shape_cast %69 : vector<8xf32> to vector<8x1xf32>
    %71 = tpu.reciprocal %70 {approx = true} : vector<8x1xf32> -> vector<8x1xf32>
    %72 = vector.broadcast %71 : vector<8x1xf32> to vector<8x8xf32>
    %73 = arith.mulf %68, %72 : vector<8x8xf32>
    %74 = arith.truncf %73 : vector<8x8xf32> to vector<8x8xbf16>
    %75 = vector.extract_strided_slice %35 {offsets = [0, 8], sizes = [8, 8], strides = [1, 1]} : vector<8x32xbf16> to vector<8x8xbf16>
    %cst_22 = arith.constant dense<0.000000e+00> : vector<8x8xf32>
    %76 = tpu.matmul %74, %75, %cst_22 {dimension_numbers = #tpu.dot_dimension_numbers<[1], [0], [0], [1], [0, 0, 1, 1], [], []>} : vector<8x8xbf16>, vector<8x8xbf16>, vector<8x8xf32> -> vector<8x8xf32>
    %77 = arith.truncf %76 : vector<8x8xf32> to vector<8x8xbf16>
    %78 = vector.extract_strided_slice %31 {offsets = [0, 16], sizes = [8, 8], strides = [1, 1]} : vector<8x32xbf16> to vector<8x8xbf16>
    %79 = vector.extract_strided_slice %33 {offsets = [0, 16], sizes = [8, 8], strides = [1, 1]} : vector<8x32xbf16> to vector<8x8xbf16>
    "tpu.trace_start"() <{level = 10 : i32, message = "td,sd->ts"}> : () -> ()
    %cst_23 = arith.constant dense<0.000000e+00> : vector<8x8xf32>
    %80 = tpu.matmul %78, %79, %cst_23 {dimension_numbers = #tpu.dot_dimension_numbers<[1], [1], [0], [0], [0, 0, 1, 0], [], []>} : vector<8x8xbf16>, vector<8x8xbf16>, vector<8x8xf32> -> vector<8x8xf32>
    "tpu.trace_stop"() : () -> ()
    %81 = arith.addf %80, %41 : vector<8x8xf32>
    %cst_24 = arith.constant dense<0xFF800000> : vector<8xf32>
    %82 = vector.multi_reduction <maximumf>, %81, %cst_24 [1] : vector<8x8xf32> to vector<8xf32>
    %83 = vector.shape_cast %82 : vector<8xf32> to vector<8x1xf32>
    %84 = vector.broadcast %83 : vector<8x1xf32> to vector<8x8xf32>
    %85 = arith.subf %81, %84 : vector<8x8xf32>
    %86 = math.exp %85 : vector<8x8xf32>
    %cst_25 = arith.constant dense<0.000000e+00> : vector<8xf32>
    %87 = vector.multi_reduction <add>, %86, %cst_25 [1] : vector<8x8xf32> to vector<8xf32>
    %88 = vector.shape_cast %87 : vector<8xf32> to vector<8x1xf32>
    %89 = tpu.reciprocal %88 {approx = true} : vector<8x1xf32> -> vector<8x1xf32>
    %90 = vector.broadcast %89 : vector<8x1xf32> to vector<8x8xf32>
    %91 = arith.mulf %86, %90 : vector<8x8xf32>
    %92 = arith.truncf %91 : vector<8x8xf32> to vector<8x8xbf16>
    %93 = vector.extract_strided_slice %35 {offsets = [0, 16], sizes = [8, 8], strides = [1, 1]} : vector<8x32xbf16> to vector<8x8xbf16>
    %cst_26 = arith.constant dense<0.000000e+00> : vector<8x8xf32>
    %94 = tpu.matmul %92, %93, %cst_26 {dimension_numbers = #tpu.dot_dimension_numbers<[1], [0], [0], [1], [0, 0, 1, 1], [], []>} : vector<8x8xbf16>, vector<8x8xbf16>, vector<8x8xf32> -> vector<8x8xf32>
    %95 = arith.truncf %94 : vector<8x8xf32> to vector<8x8xbf16>
    %96 = vector.extract_strided_slice %31 {offsets = [0, 24], sizes = [8, 8], strides = [1, 1]} : vector<8x32xbf16> to vector<8x8xbf16>
    %97 = vector.extract_strided_slice %33 {offsets = [0, 24], sizes = [8, 8], strides = [1, 1]} : vector<8x32xbf16> to vector<8x8xbf16>
    "tpu.trace_start"() <{level = 10 : i32, message = "td,sd->ts"}> : () -> ()
    %cst_27 = arith.constant dense<0.000000e+00> : vector<8x8xf32>
    %98 = tpu.matmul %96, %97, %cst_27 {dimension_numbers = #tpu.dot_dimension_numbers<[1], [1], [0], [0], [0, 0, 1, 0], [], []>} : vector<8x8xbf16>, vector<8x8xbf16>, vector<8x8xf32> -> vector<8x8xf32>
    "tpu.trace_stop"() : () -> ()
    %99 = arith.addf %98, %41 : vector<8x8xf32>
    %cst_28 = arith.constant dense<0xFF800000> : vector<8xf32>
    %100 = vector.multi_reduction <maximumf>, %99, %cst_28 [1] : vector<8x8xf32> to vector<8xf32>
    %101 = vector.shape_cast %100 : vector<8xf32> to vector<8x1xf32>
    %102 = vector.broadcast %101 : vector<8x1xf32> to vector<8x8xf32>
    %103 = arith.subf %99, %102 : vector<8x8xf32>
    %104 = math.exp %103 : vector<8x8xf32>
    %cst_29 = arith.constant dense<0.000000e+00> : vector<8xf32>
    %105 = vector.multi_reduction <add>, %104, %cst_29 [1] : vector<8x8xf32> to vector<8xf32>
    %106 = vector.shape_cast %105 : vector<8xf32> to vector<8x1xf32>
    %107 = tpu.reciprocal %106 {approx = true} : vector<8x1xf32> -> vector<8x1xf32>
    %108 = vector.broadcast %107 : vector<8x1xf32> to vector<8x8xf32>
    %109 = arith.mulf %104, %108 : vector<8x8xf32>
    %110 = arith.truncf %109 : vector<8x8xf32> to vector<8x8xbf16>
    %111 = vector.extract_strided_slice %35 {offsets = [0, 24], sizes = [8, 8], strides = [1, 1]} : vector<8x32xbf16> to vector<8x8xbf16>
    %cst_30 = arith.constant dense<0.000000e+00> : vector<8x8xf32>
    %112 = tpu.matmul %110, %111, %cst_30 {dimension_numbers = #tpu.dot_dimension_numbers<[1], [0], [0], [1], [0, 0, 1, 1], [], []>} : vector<8x8xbf16>, vector<8x8xbf16>, vector<8x8xf32> -> vector<8x8xf32>
    %113 = arith.truncf %112 : vector<8x8xf32> to vector<8x8xbf16>
    %114 = tpu.concatenate %59, %77, %95, %113 in 1 : vector<8x8xbf16>, vector<8x8xbf16>, vector<8x8xbf16>, vector<8x8xbf16> -> vector<8x32xbf16>
    %c0_31 = arith.constant 0 : index
    %c0_32 = arith.constant 0 : index
    %115 = vector.load %arg3[%c0_31, %c0_32] : memref<32x32xbf16, #tpu.memory_space<vmem>>, vector<32x32xbf16>
    %cst_33 = arith.constant dense<0.000000e+00> : vector<8x32xf32>
    %116 = tpu.matmul %114, %115, %cst_33 {dimension_numbers = #tpu.dot_dimension_numbers<[1], [0], [0], [1], [0, 0, 1, 1], [], []>} : vector<8x32xbf16>, vector<32x32xbf16>, vector<8x32xf32> -> vector<8x32xf32>
    %c0_34 = arith.constant 0 : index
    %c0_35 = arith.constant 0 : index
    %117 = vector.load %arg4[%c0_34, %c0_35] : memref<1x32xf32, #tpu.memory_space<vmem>>, vector<1x32xf32>
    %118 = vector.broadcast %117 : vector<1x32xf32> to vector<8x32xf32>
    %119 = arith.addf %116, %118 : vector<8x32xf32>
    %120 = arith.addf %0, %119 : vector<8x32xf32>
    %c0_36 = arith.constant 0 : index
    %c0_37 = arith.constant 0 : index
    %121 = vector.load %arg11[%c0_36, %c0_37] : memref<1x32xf32, #tpu.memory_space<vmem>>, vector<1x32xf32>
    %c0_38 = arith.constant 0 : index
    %c0_39 = arith.constant 0 : index
    %122 = vector.load %arg12[%c0_38, %c0_39] : memref<1x32xf32, #tpu.memory_space<vmem>>, vector<1x32xf32>
    %cst_40 = arith.constant dense<0.000000e+00> : vector<8xf32>
    %123 = vector.multi_reduction <add>, %120, %cst_40 [1] : vector<8x32xf32> to vector<8xf32>
    %124 = vector.shape_cast %123 : vector<8xf32> to vector<8x1xf32>
    %cst_41 = arith.constant 3.200000e+01 : f32
    %125 = vector.broadcast %cst_41 : f32 to vector<8x1xf32>
    %126 = arith.divf %124, %125 : vector<8x1xf32>
    %127 = vector.broadcast %126 : vector<8x1xf32> to vector<8x32xf32>
    %128 = arith.subf %120, %127 : vector<8x32xf32>
    %129 = arith.mulf %128, %128 : vector<8x32xf32>
    %cst_42 = arith.constant dense<0.000000e+00> : vector<8xf32>
    %130 = vector.multi_reduction <add>, %129, %cst_42 [1] : vector<8x32xf32> to vector<8xf32>
    %131 = vector.shape_cast %130 : vector<8xf32> to vector<8x1xf32>
    %cst_43 = arith.constant 3.200000e+01 : f32
    %132 = vector.broadcast %cst_43 : f32 to vector<8x1xf32>
    %133 = arith.divf %131, %132 : vector<8x1xf32>
    %134 = vector.broadcast %126 : vector<8x1xf32> to vector<8x32xf32>
    %135 = arith.subf %120, %134 : vector<8x32xf32>
    %cst_44 = arith.constant 9.99999974E-6 : f32
    %136 = vector.broadcast %cst_44 : f32 to vector<8x1xf32>
    %137 = arith.addf %133, %136 : vector<8x1xf32>
    %138 = math.rsqrt %137 : vector<8x1xf32>
    %139 = vector.broadcast %138 : vector<8x1xf32> to vector<8x32xf32>
    %140 = arith.mulf %135, %139 : vector<8x32xf32>
    %141 = vector.broadcast %121 : vector<1x32xf32> to vector<8x32xf32>
    %142 = arith.mulf %141, %140 : vector<8x32xf32>
    %143 = vector.broadcast %122 : vector<1x32xf32> to vector<8x32xf32>
    %144 = arith.addf %142, %143 : vector<8x32xf32>
    %145 = arith.truncf %144 : vector<8x32xf32> to vector<8x32xbf16>
    %c0_45 = arith.constant 0 : index
    %c0_46 = arith.constant 0 : index
    %146 = vector.load %arg7[%c0_45, %c0_46] : memref<32x128xbf16, #tpu.memory_space<vmem>>, vector<32x128xbf16>
    %cst_47 = arith.constant dense<0.000000e+00> : vector<8x128xf32>
    %147 = tpu.matmul %145, %146, %cst_47 {dimension_numbers = #tpu.dot_dimension_numbers<[1], [0], [0], [1], [0, 0, 1, 1], [], []>} : vector<8x32xbf16>, vector<32x128xbf16>, vector<8x128xf32> -> vector<8x128xf32>
    %c0_48 = arith.constant 0 : index
    %c0_49 = arith.constant 0 : index
    %148 = vector.load %arg8[%c0_48, %c0_49] : memref<1x128xf32, #tpu.memory_space<vmem>>, vector<1x128xf32>
    %149 = vector.broadcast %148 : vector<1x128xf32> to vector<8x128xf32>
    %150 = arith.addf %147, %149 : vector<8x128xf32>
    %cst_50 = arith.constant 5.000000e-01 : f32
    %151 = vector.broadcast %cst_50 : f32 to vector<8x128xf32>
    %152 = arith.mulf %151, %150 : vector<8x128xf32>
    %cst_51 = arith.constant 4.471500e-02 : f32
    %153 = vector.broadcast %cst_51 : f32 to vector<8x128xf32>
    %154 = arith.mulf %153, %150 : vector<8x128xf32>
    %155 = arith.mulf %154, %150 : vector<8x128xf32>
    %156 = arith.mulf %155, %150 : vector<8x128xf32>
    %157 = arith.addf %150, %156 : vector<8x128xf32>
    %cst_52 = arith.constant 0.797884583 : f32
    %158 = vector.broadcast %cst_52 : f32 to vector<8x128xf32>
    %159 = arith.mulf %158, %157 : vector<8x128xf32>
    %160 = math.tanh %159 : vector<8x128xf32>
    %cst_53 = arith.constant 1.000000e+00 : f32
    %161 = vector.broadcast %cst_53 : f32 to vector<8x128xf32>
    %162 = arith.addf %161, %160 : vector<8x128xf32>
    %163 = arith.mulf %152, %162 : vector<8x128xf32>
    %164 = arith.truncf %163 : vector<8x128xf32> to vector<8x128xbf16>
    %c0_54 = arith.constant 0 : index
    %c0_55 = arith.constant 0 : index
    %165 = vector.load %arg9[%c0_54, %c0_55] : memref<128x32xbf16, #tpu.memory_space<vmem>>, vector<128x32xbf16>
    %cst_56 = arith.constant dense<0.000000e+00> : vector<8x32xf32>
    %166 = tpu.matmul %164, %165, %cst_56 {dimension_numbers = #tpu.dot_dimension_numbers<[1], [0], [0], [1], [0, 0, 1, 1], [], []>} : vector<8x128xbf16>, vector<128x32xbf16>, vector<8x32xf32> -> vector<8x32xf32>
    %c0_57 = arith.constant 0 : index
    %c0_58 = arith.constant 0 : index
    %167 = vector.load %arg10[%c0_57, %c0_58] : memref<1x32xf32, #tpu.memory_space<vmem>>, vector<1x32xf32>
    %168 = vector.broadcast %167 : vector<1x32xf32> to vector<8x32xf32>
    %169 = arith.addf %166, %168 : vector<8x32xf32>
    %170 = arith.addf %120, %169 : vector<8x32xf32>
    %c0_59 = arith.constant 0 : index
    %c0_60 = arith.constant 0 : index
    %171 = vector.load %arg13[%c0_59, %c0_60] : memref<8x32xf32, #tpu.memory_space<vmem>>, vector<8x32xf32>
    tpu.vector_store %arg13[%c0_59, %c0_60], %170 {strides = array<i32>} : memref<8x32xf32, #tpu.memory_space<vmem>>, vector<8x32xf32>,
    return
  }
  func.func @transform_0(%arg0: i32) -> (i32, i32) {
    %c0_i32 = arith.constant 0 : i32
    %c0_i32_0 = arith.constant 0 : i32
    return %arg0, %c0_i32 : i32, i32
  }
  func.func @transform_1(%arg0: i32) -> (i32, i32) {
    %c0_i32 = arith.constant 0 : i32
    %c0_i32_0 = arith.constant 0 : i32
    %c0_i32_1 = arith.constant 0 : i32
    return %c0_i32, %c0_i32_0 : i32, i32
  }
  func.func @transform_2(%arg0: i32) -> (i32, i32) {
    %c0_i32 = arith.constant 0 : i32
    %c0_i32_0 = arith.constant 0 : i32
    %c0_i32_1 = arith.constant 0 : i32
    return %c0_i32, %c0_i32_0 : i32, i32
  }
  func.func @transform_3(%arg0: i32) -> (i32, i32) {
    %c0_i32 = arith.constant 0 : i32
    %c0_i32_0 = arith.constant 0 : i32
    %c0_i32_1 = arith.constant 0 : i32
    return %c0_i32, %c0_i32_0 : i32, i32
  }
  func.func @transform_4(%arg0: i32) -> (i32, i32) {
    %c0_i32 = arith.constant 0 : i32
    %c0_i32_0 = arith.constant 0 : i32
    %c0_i32_1 = arith.constant 0 : i32
    return %c0_i32, %c0_i32_0 : i32, i32
  }
  func.func @transform_5(%arg0: i32) -> (i32, i32) {
    %c0_i32 = arith.constant 0 : i32
    %c0_i32_0 = arith.constant 0 : i32
    %c0_i32_1 = arith.constant 0 : i32
    return %c0_i32, %c0_i32_0 : i32, i32
  }
  func.func @transform_6(%arg0: i32) -> (i32, i32) {
    %c0_i32 = arith.constant 0 : i32
    %c0_i32_0 = arith.constant 0 : i32
    %c0_i32_1 = arith.constant 0 : i32
    return %c0_i32, %c0_i32_0 : i32, i32
  }
  func.func @transform_7(%arg0: i32) -> (i32, i32) {
    %c0_i32 = arith.constant 0 : i32
    %c0_i32_0 = arith.constant 0 : i32
    %c0_i32_1 = arith.constant 0 : i32
    return %c0_i32, %c0_i32_0 : i32, i32
  }
  func.func @transform_8(%arg0: i32) -> (i32, i32) {
    %c0_i32 = arith.constant 0 : i32
    %c0_i32_0 = arith.constant 0 : i32
    %c0_i32_1 = arith.constant 0 : i32
    return %c0_i32, %c0_i32_0 : i32, i32
  }
  func.func @transform_9(%arg0: i32) -> (i32, i32) {
    %c0_i32 = arith.constant 0 : i32
    %c0_i32_0 = arith.constant 0 : i32
    %c0_i32_1 = arith.constant 0 : i32
    return %c0_i32, %c0_i32_0 : i32, i32
  }
  func.func @transform_10(%arg0: i32) -> (i32, i32) {
    %c0_i32 = arith.constant 0 : i32
    %c0_i32_0 = arith.constant 0 : i32
    %c0_i32_1 = arith.constant 0 : i32
    return %c0_i32, %c0_i32_0 : i32, i32
  }
  func.func @transform_11(%arg0: i32) -> (i32, i32) {
    %c0_i32 = arith.constant 0 : i32
    %c0_i32_0 = arith.constant 0 : i32
    %c0_i32_1 = arith.constant 0 : i32
    return %c0_i32, %c0_i32_0 : i32, i32
  }
  func.func @transform_12(%arg0: i32) -> (i32, i32) {
    %c0_i32 = arith.constant 0 : i32
    %c0_i32_0 = arith.constant 0 : i32
    return %arg0, %c0_i32 : i32, i32
  }
}

</mosaic_0001>

<llo_original>
// kernel: tpu_custom_call.1
$region0: #{tpu_custom_call.1}
  #allocation0 [shape = 'u32[]', space=smem, size = 0x4, offset = 0x4, fixed_abs, tag = 'smem constant byte address 0x4 - core index']
  #allocation1 [shape = 'u32[144,128]{1,0:T(1,128)}', space=vmem, size = 0x12000, scoped, tag = 'internal scratch']
  %s0 = inlined_call_operand.vmem [shape: f32[16,32], index: 0, kind: input, shape index: {}]
  %s1 = inlined_call_operand.vmem [shape: bf16[32,96], index: 1, kind: input, shape index: {}]
  %s2 = inlined_call_operand.vmem [shape: bf16[32,32], index: 2, kind: input, shape index: {}]
  %s3 = inlined_call_operand.vmem [shape: f32[1,32], index: 3, kind: input, shape index: {}]
  %s4 = inlined_call_operand.vmem [shape: f32[1,32], index: 4, kind: input, shape index: {}]
  %s5 = inlined_call_operand.vmem [shape: f32[1,32], index: 5, kind: input, shape index: {}]
  %s6 = inlined_call_operand.vmem [shape: bf16[32,128], index: 6, kind: input, shape index: {}]
  %s7 = inlined_call_operand.vmem [shape: f32[1,128], index: 7, kind: input, shape index: {}]
  %s8 = inlined_call_operand.vmem [shape: bf16[128,32], index: 8, kind: input, shape index: {}]
  %s9 = inlined_call_operand.vmem [shape: f32[1,32], index: 9, kind: input, shape index: {}]
  %s10 = inlined_call_operand.vmem [shape: f32[1,32], index: 10, kind: input, shape index: {}]
  %s11 = inlined_call_operand.vmem [shape: f32[1,32], index: 11, kind: input, shape index: {}]
  %s12 = inlined_call_operand.hbm [shape: f32[16,32], index: 12, kind: output, shape index: {}]
  %s13 = sld [smem:[#allocation0]]
  $region81: #{tpu_custom_call.1} parent=0
    _
  %s15 = ssub.s32 1, %s13
  %s16 = scalar_select 0, %s15, %s13
  $region1: #{tpu_custom_call.1} parent=0
    #allocation2 [shape = 'u8[8192]{0}', space=vmem, size = 0x2000, scoped, tag = 'output window, operand 0']
    #allocation3 [shape = 's32[2]{0}', space=sflag, size = 0x8, scoped, tag = 'scoped memory for tpu_custom_call.1']
    %17 = vsyncpa [#allocation3], 0
    %s18 = scalar_lea.sflag [#allocation3], 1
    %19 = vsyncpa %s18, 0
    loop: start=0, step=1, limit=4
    $region2: #{tpu_custom_call.1} parent=1 // loop_pre_header
      _
    $region3: #{tpu_custom_call.1} parent=1 // loop_header
      %s21 = sphi 0, %s25
      %p22 = scmp.ge.s32.totalorder %s21, 4
      %s31 = sphi 0, %s33
      %s34 = sphi 0, %s31
      %s35 = sphi 0, %s34
      %s51 = sphi 0, %s35
      %s55 = sphi 0, %s55
      %s57 = sphi 0, %s55
      %s58 = sphi 0, %s57
      %s72 = sphi 0, %s58
      %s76 = sphi 0, %s76
      %s78 = sphi 0, %s76
      %s79 = sphi 0, %s78
      %s93 = sphi 0, %s79
      %s97 = sphi 0, %s97
      %s99 = sphi 0, %s97
      %s100 = sphi 0, %s99
      %s114 = sphi 0, %s100
      %s118 = sphi 0, %s118
      %s120 = sphi 0, %s118
      %s121 = sphi 0, %s120
      %s135 = sphi 0, %s121
      %s139 = sphi 0, %s139
      %s141 = sphi 0, %s139
      %s142 = sphi 0, %s141
      %s156 = sphi 0, %s142
      %s160 = sphi 0, %s160
      %s162 = sphi 0, %s160
      %s163 = sphi 0, %s162
      %s177 = sphi 0, %s163
      %s181 = sphi 0, %s181
      %s183 = sphi 0, %s181
      %s184 = sphi 0, %s183
      %s198 = sphi 0, %s184
      %s202 = sphi 0, %s202
      %s204 = sphi 0, %s202
      %s205 = sphi 0, %s204
      %s219 = sphi 0, %s205
      %s223 = sphi 0, %s223
      %s225 = sphi 0, %s223
      %s226 = sphi 0, %s225
      %s240 = sphi 0, %s226
      %s244 = sphi 0, %s244
      %s246 = sphi 0, %s244
      %s247 = sphi 0, %s246
      %s261 = sphi 0, %s247
      %s265 = sphi 0, %s265
      %s267 = sphi 0, %s265
      %s268 = sphi 0, %s267
      %s282 = sphi 0, %s268
      %s288 = sphi 0, %s290
      %s291 = sphi 0, %s288
      %s292 = sphi 0, %s291
      %s308 = sphi 0, %s292
    $region4: #{tpu_custom_call.1} parent=1 // loop_header_branch
      %24 = sbr.rel (%p22) target = $region8
    $region5: #{tpu_custom_call.1} parent=1 // loop_body
      %s26 = ssub.s32 %s21, 1
      %s27 = ssub.s32 %s21, 2
      %s28 = sadd.s32 %s21, 1
      %s29 = ssub.s32 %s21, %s28
      %p30 = scmp.eq.s32.totalorder %s29, 0
      %s32 = sadd.s32 %s31, 1
      %s33 = scalar_select %p30, %s31, %s32
      %p36 = pneg %p30
      %p37 = scmp.eq.s32.totalorder %s21, 1
      %p38 = por %p36, %p37
      %p39 = scmp.ne.s32.totalorder %s31, %s34
      %p40 = scmp.eq.s32.totalorder %s21, 0
      %p41 = por %p39, %p40
      %p42 = scmp.ne.s32.totalorder %s31, %s34
      %p43 = scmp.eq.s32.totalorder %s26, 1
      %p44 = por %p42, %p43
      %p45 = scmp.ne.s32.totalorder %s34, %s35
      %p46 = scmp.eq.s32.totalorder %s26, 0
      %p47 = por %p45, %p46
      %p48 = scmp.ne.s32.totalorder %s34, %s35
      %p49 = scmp.eq.s32.totalorder %s27, 1
      %p50 = por %p48, %p49
      %p52 = scmp.ne.s32.totalorder %s35, %s51
      %p53 = scmp.eq.s32.totalorder %s27, 0
      %p54 = por %p52, %p53
      %s56 = sadd.s32 %s55, 1
      %p59 = scmp.eq.s32.totalorder %s21, 1
      %p60 = scmp.ne.s32.totalorder %s55, %s57
      %p61 = scmp.eq.s32.totalorder %s21, 0
      %p62 = por %p60, %p61
      %p63 = scmp.ne.s32.totalorder %s55, %s57
      %p64 = scmp.eq.s32.totalorder %s26, 1
      %p65 = por %p63, %p64
      %p66 = scmp.ne.s32.totalorder %s57, %s58
      %p67 = scmp.eq.s32.totalorder %s26, 0
      %p68 = por %p66, %p67
      %p69 = scmp.ne.s32.totalorder %s57, %s58
      %p70 = scmp.eq.s32.totalorder %s27, 1
      %p71 = por %p69, %p70
      %p73 = scmp.ne.s32.totalorder %s58, %s72
      %p74 = scmp.eq.s32.totalorder %s27, 0
      %p75 = por %p73, %p74
      %s77 = sadd.s32 %s76, 1
      %p80 = scmp.eq.s32.totalorder %s21, 1
      %p81 = scmp.ne.s32.totalorder %s76, %s78
      %p82 = scmp.eq.s32.totalorder %s21, 0
      %p83 = por %p81, %p82
      %p84 = scmp.ne.s32.totalorder %s76, %s78
      %p85 = scmp.eq.s32.totalorder %s26, 1
      %p86 = por %p84, %p85
      %p87 = scmp.ne.s32.totalorder %s78, %s79
      %p88 = scmp.eq.s32.totalorder %s26, 0
      %p89 = por %p87, %p88
      %p90 = scmp.ne.s32.totalorder %s78, %s79
      %p91 = scmp.eq.s32.totalorder %s27, 1
      %p92 = por %p90, %p91
      %p94 = scmp.ne.s32.totalorder %s79, %s93
      %p95 = scmp.eq.s32.totalorder %s27, 0
      %p96 = por %p94, %p95
      %s98 = sadd.s32 %s97, 1
      %p101 = scmp.eq.s32.totalorder %s21, 1
      %p102 = scmp.ne.s32.totalorder %s97, %s99
      %p103 = scmp.eq.s32.totalorder %s21, 0
      %p104 = por %p102, %p103
      %p105 = scmp.ne.s32.totalorder %s97, %s99
      %p106 = scmp.eq.s32.totalorder %s26, 1
      %p107 = por %p105, %p106
      %p108 = scmp.ne.s32.totalorder %s99, %s100
      %p109 = scmp.eq.s32.totalorder %s26, 0
      %p110 = por %p108, %p109
      %p111 = scmp.ne.s32.totalorder %s99, %s100
      %p112 = scmp.eq.s32.totalorder %s27, 1
      %p113 = por %p111, %p112
      %p115 = scmp.ne.s32.totalorder %s100, %s114
      %p116 = scmp.eq.s32.totalorder %s27, 0
      %p117 = por %p115, %p116
      %s119 = sadd.s32 %s118, 1
      %p122 = scmp.eq.s32.totalorder %s21, 1
      %p123 = scmp.ne.s32.totalorder %s118, %s120
      %p124 = scmp.eq.s32.totalorder %s21, 0
      %p125 = por %p123, %p124
      %p126 = scmp.ne.s32.totalorder %s118, %s120
      %p127 = scmp.eq.s32.totalorder %s26, 1
      %p128 = por %p126, %p127
      %p129 = scmp.ne.s32.totalorder %s120, %s121
      %p130 = scmp.eq.s32.totalorder %s26, 0
      %p131 = por %p129, %p130
      %p132 = scmp.ne.s32.totalorder %s120, %s121
      %p133 = scmp.eq.s32.totalorder %s27, 1
      %p134 = por %p132, %p133
      %p136 = scmp.ne.s32.totalorder %s121, %s135
      %p137 = scmp.eq.s32.totalorder %s27, 0
      %p138 = por %p136, %p137
      %s140 = sadd.s32 %s139, 1
      %p143 = scmp.eq.s32.totalorder %s21, 1
      %p144 = scmp.ne.s32.totalorder %s139, %s141
      %p145 = scmp.eq.s32.totalorder %s21, 0
      %p146 = por %p144, %p145
      %p147 = scmp.ne.s32.totalorder %s139, %s141
      %p148 = scmp.eq.s32.totalorder %s26, 1
      %p149 = por %p147, %p148
      %p150 = scmp.ne.s32.totalorder %s141, %s142
      %p151 = scmp.eq.s32.totalorder %s26, 0
      %p152 = por %p150, %p151
      %p153 = scmp.ne.s32.totalorder %s141, %s142
      %p154 = scmp.eq.s32.totalorder %s27, 1
      %p155 = por %p153, %p154
      %p157 = scmp.ne.s32.totalorder %s142, %s156
      %p158 = scmp.eq.s32.totalorder %s27, 0
      %p159 = por %p157, %p158
      %s161 = sadd.s32 %s160, 1
      %p164 = scmp.eq.s32.totalorder %s21, 1
      %p165 = scmp.ne.s32.totalorder %s160, %s162
      %p166 = scmp.eq.s32.totalorder %s21, 0
      %p167 = por %p165, %p166
      %p168 = scmp.ne.s32.totalorder %s160, %s162
      %p169 = scmp.eq.s32.totalorder %s26, 1
      %p170 = por %p168, %p169
      %p171 = scmp.ne.s32.totalorder %s162, %s163
      %p172 = scmp.eq.s32.totalorder %s26, 0
      %p173 = por %p171, %p172
      %p174 = scmp.ne.s32.totalorder %s162, %s163
      %p175 = scmp.eq.s32.totalorder %s27, 1
      %p176 = por %p174, %p175
      %p178 = scmp.ne.s32.totalorder %s163, %s177
      %p179 = scmp.eq.s32.totalorder %s27, 0
      %p180 = por %p178, %p179
      %s182 = sadd.s32 %s181, 1
      %p185 = scmp.eq.s32.totalorder %s21, 1
      %p186 = scmp.ne.s32.totalorder %s181, %s183
      %p187 = scmp.eq.s32.totalorder %s21, 0
      %p188 = por %p186, %p187
      %p189 = scmp.ne.s32.totalorder %s181, %s183
      %p190 = scmp.eq.s32.totalorder %s26, 1
      %p191 = por %p189, %p190
      %p192 = scmp.ne.s32.totalorder %s183, %s184
      %p193 = scmp.eq.s32.totalorder %s26, 0
      %p194 = por %p192, %p193
      %p195 = scmp.ne.s32.totalorder %s183, %s184
      %p196 = scmp.eq.s32.totalorder %s27, 1
      %p197 = por %p195, %p196
      %p199 = scmp.ne.s32.totalorder %s184, %s198
      %p200 = scmp.eq.s32.totalorder %s27, 0
      %p201 = por %p199, %p200
      %s203 = sadd.s32 %s202, 1
      %p206 = scmp.eq.s32.totalorder %s21, 1
      %p207 = scmp.ne.s32.totalorder %s202, %s204
      %p208 = scmp.eq.s32.totalorder %s21, 0
      %p209 = por %p207, %p208
      %p210 = scmp.ne.s32.totalorder %s202, %s204
      %p211 = scmp.eq.s32.totalorder %s26, 1
      %p212 = por %p210, %p211
      %p213 = scmp.ne.s32.totalorder %s204, %s205
      %p214 = scmp.eq.s32.totalorder %s26, 0
      %p215 = por %p213, %p214
      %p216 = scmp.ne.s32.totalorder %s204, %s205
      %p217 = scmp.eq.s32.totalorder %s27, 1
      %p218 = por %p216, %p217
      %p220 = scmp.ne.s32.totalorder %s205, %s219
      %p221 = scmp.eq.s32.totalorder %s27, 0
      %p222 = por %p220, %p221
      %s224 = sadd.s32 %s223, 1
      %p227 = scmp.eq.s32.totalorder %s21, 1
      %p228 = scmp.ne.s32.totalorder %s223, %s225
      %p229 = scmp.eq.s32.totalorder %s21, 0
      %p230 = por %p228, %p229
      %p231 = scmp.ne.s32.totalorder %s223, %s225
      %p232 = scmp.eq.s32.totalorder %s26, 1
      %p233 = por %p231, %p232
      %p234 = scmp.ne.s32.totalorder %s225, %s226
      %p235 = scmp.eq.s32.totalorder %s26, 0
      %p236 = por %p234, %p235
      %p237 = scmp.ne.s32.totalorder %s225, %s226
      %p238 = scmp.eq.s32.totalorder %s27, 1
      %p239 = por %p237, %p238
      %p241 = scmp.ne.s32.totalorder %s226, %s240
      %p242 = scmp.eq.s32.totalorder %s27, 0
      %p243 = por %p241, %p242
      %s245 = sadd.s32 %s244, 1
      %p248 = scmp.eq.s32.totalorder %s21, 1
      %p249 = scmp.ne.s32.totalorder %s244, %s246
      %p250 = scmp.eq.s32.totalorder %s21, 0
      %p251 = por %p249, %p250
      %p252 = scmp.ne.s32.totalorder %s244, %s246
      %p253 = scmp.eq.s32.totalorder %s26, 1
      %p254 = por %p252, %p253
      %p255 = scmp.ne.s32.totalorder %s246, %s247
      %p256 = scmp.eq.s32.totalorder %s26, 0
      %p257 = por %p255, %p256
      %p258 = scmp.ne.s32.totalorder %s246, %s247
      %p259 = scmp.eq.s32.totalorder %s27, 1
      %p260 = por %p258, %p259
      %p262 = scmp.ne.s32.totalorder %s247, %s261
      %p263 = scmp.eq.s32.totalorder %s27, 0
      %p264 = por %p262, %p263
      %s266 = sadd.s32 %s265, 1
      %p269 = scmp.eq.s32.totalorder %s21, 1
      %p270 = scmp.ne.s32.totalorder %s265, %s267
      %p271 = scmp.eq.s32.totalorder %s21, 0
      %p272 = por %p270, %p271
      %p273 = scmp.ne.s32.totalorder %s265, %s267
      %p274 = scmp.eq.s32.totalorder %s26, 1
      %p275 = por %p273, %p274
      %p276 = scmp.ne.s32.totalorder %s267, %s268
      %p277 = scmp.eq.s32.totalorder %s26, 0
      %p278 = por %p276, %p277
      %p279 = scmp.ne.s32.totalorder %s267, %s268
      %p280 = scmp.eq.s32.totalorder %s27, 1
      %p281 = por %p279, %p280
      %p283 = scmp.ne.s32.totalorder %s268, %s282
      %p284 = scmp.eq.s32.totalorder %s27, 0
      %p285 = por %p283, %p284
      %s286 = ssub.s32 %s21, %s28
      %p287 = scmp.eq.s32.totalorder %s286, 0
      %s289 = sadd.s32 %s288, 1
      %s290 = scalar_select %p287, %s288, %s289
      %p293 = pneg %p287
      %p294 = scmp.eq.s32.totalorder %s21, 1
      %p295 = por %p293, %p294
      %p296 = scmp.ne.s32.totalorder %s288, %s291
      %p297 = scmp.eq.s32.totalorder %s21, 0
      %p298 = por %p296, %p297
      %p299 = scmp.ne.s32.totalorder %s288, %s291
      %p300 = scmp.eq.s32.totalorder %s26, 1
      %p301 = por %p299, %p300
      %p302 = scmp.ne.s32.totalorder %s291, %s292
      %p303 = scmp.eq.s32.totalorder %s26, 0
      %p304 = por %p302, %p303
      %p305 = scmp.ne.s32.totalorder %s291, %s292
      %p306 = scmp.eq.s32.totalorder %s27, 1
      %p307 = por %p305, %p306
      %p309 = scmp.ne.s32.totalorder %s292, %s308
      %p310 = scmp.eq.s32.totalorder %s27, 0
      %p311 = por %p309, %p310
      %p312 = scmp.le.s32.totalorder 1, %s21
      %p313 = scmp.lt.s32.totalorder %s21, 3
      %p314 = pnand %p312, %p313
      %p315 = pneg %p314
      // Predicated region
      $region9: #{tpu_custom_call.1} parent=5 // pred_check
        _
      $region10: #{tpu_custom_call.1} parent=5 // pred_check_branch
        %317 = sbr.rel (%p314) target = $region12
      $region11: #{tpu_custom_call.1} parent=5 // pred_region
        %s318 = ssub.s32 %s21, 1
        // Predicated region
        $region13: #{tpu_custom_call.1} parent=11 // pred_check
          %p319 = pneg %p68
        $region14: #{tpu_custom_call.1} parent=11 // pred_check_branch
          %321 = sbr.rel (%p319) target = $region16
        $region15: #{tpu_custom_call.1} parent=11 // pred_region
          _
        $region16: #{tpu_custom_call.1} parent=11 // pred_fallthru
          _
        // Predicated region
        $region17: #{tpu_custom_call.1} parent=11 // pred_check
          %p322 = pneg %p89
        $region18: #{tpu_custom_call.1} parent=11 // pred_check_branch
          %324 = sbr.rel (%p322) target = $region20
        $region19: #{tpu_custom_call.1} parent=11 // pred_region
          _
        $region20: #{tpu_custom_call.1} parent=11 // pred_fallthru
          _
        // Predicated region
        $region21: #{tpu_custom_call.1} parent=11 // pred_check
          %p325 = pneg %p110
        $region22: #{tpu_custom_call.1} parent=11 // pred_check_branch
          %327 = sbr.rel (%p325) target = $region24
        $region23: #{tpu_custom_call.1} parent=11 // pred_region
          _
        $region24: #{tpu_custom_call.1} parent=11 // pred_fallthru
          _
        // Predicated region
        $region25: #{tpu_custom_call.1} parent=11 // pred_check
          %p328 = pneg %p131
        $region26: #{tpu_custom_call.1} parent=11 // pred_check_branch
          %330 = sbr.rel (%p328) target = $region28
        $region27: #{tpu_custom_call.1} parent=11 // pred_region
          _
        $region28: #{tpu_custom_call.1} parent=11 // pred_fallthru
          _
        // Predicated region
        $region29: #{tpu_custom_call.1} parent=11 // pred_check
          %p331 = pneg %p152
        $region30: #{tpu_custom_call.1} parent=11 // pred_check_branch
          %333 = sbr.rel (%p331) target = $region32
        $region31: #{tpu_custom_call.1} parent=11 // pred_region
          _
        $region32: #{tpu_custom_call.1} parent=11 // pred_fallthru
          _
        // Predicated region
        $region33: #{tpu_custom_call.1} parent=11 // pred_check
          %p334 = pneg %p173
        $region34: #{tpu_custom_call.1} parent=11 // pred_check_branch
          %336 = sbr.rel (%p334) target = $region36
        $region35: #{tpu_custom_call.1} parent=11 // pred_region
          _
        $region36: #{tpu_custom_call.1} parent=11 // pred_fallthru
          _
        // Predicated region
        $region37: #{tpu_custom_call.1} parent=11 // pred_check
          %p337 = pneg %p194
        $region38: #{tpu_custom_call.1} parent=11 // pred_check_branch
          %339 = sbr.rel (%p337) target = $region40
        $region39: #{tpu_custom_call.1} parent=11 // pred_region
          _
        $region40: #{tpu_custom_call.1} parent=11 // pred_fallthru
          _
        // Predicated region
        $region41: #{tpu_custom_call.1} parent=11 // pred_check
          %p340 = pneg %p215
        $region42: #{tpu_custom_call.1} parent=11 // pred_check_branch
          %342 = sbr.rel (%p340) target = $region44
        $region43: #{tpu_custom_call.1} parent=11 // pred_region
          _
        $region44: #{tpu_custom_call.1} parent=11 // pred_fallthru
          _
        // Predicated region
        $region45: #{tpu_custom_call.1} parent=11 // pred_check
          %p343 = pneg %p236
        $region46: #{tpu_custom_call.1} parent=11 // pred_check_branch
          %345 = sbr.rel (%p343) target = $region48
        $region47: #{tpu_custom_call.1} parent=11 // pred_region
          _
        $region48: #{tpu_custom_call.1} parent=11 // pred_fallthru
          _
        // Predicated region
        $region49: #{tpu_custom_call.1} parent=11 // pred_check
          %p346 = pneg %p257
        $region50: #{tpu_custom_call.1} parent=11 // pred_check_branch
          %348 = sbr.rel (%p346) target = $region52
        $region51: #{tpu_custom_call.1} parent=11 // pred_region
          _
        $region52: #{tpu_custom_call.1} parent=11 // pred_fallthru
          _
        // Predicated region
        $region53: #{tpu_custom_call.1} parent=11 // pred_check
          %p349 = pneg %p278
        $region54: #{tpu_custom_call.1} parent=11 // pred_check_branch
          %351 = sbr.rel (%p349) target = $region56
        $region55: #{tpu_custom_call.1} parent=11 // pred_region
          _
        $region56: #{tpu_custom_call.1} parent=11 // pred_fallthru
          _
      $region12: #{tpu_custom_call.1} parent=5 // pred_fallthru
        _
      %p352 = scmp.lt.s32.totalorder %s21, 2
      // Predicated region
      $region57: #{tpu_custom_call.1} parent=5 // pred_check
        %p353 = pneg %p352
      $region58: #{tpu_custom_call.1} parent=5 // pred_check_branch
        %355 = sbr.rel (%p353) target = $region60
      $region59: #{tpu_custom_call.1} parent=5 // pred_region
        // Predicated region
        $region61: #{tpu_custom_call.1} parent=59 // pred_check
          %p356 = pneg %p41
        $region62: #{tpu_custom_call.1} parent=59 // pred_check_branch
          %358 = sbr.rel (%p356) target = $region64
        $region63: #{tpu_custom_call.1} parent=59 // pred_region
          %p359 = scmp.lt.s32.totalorder %s21, 1
          %s360 = scalar_select %p359, %s21, 1
          %s361 = smul.addr %s360, 8
          %s362 = scalar_lea.vmem %s0, %s361
        $region64: #{tpu_custom_call.1} parent=59 // pred_fallthru
          _
      $region60: #{tpu_custom_call.1} parent=5 // pred_fallthru
        _
      %p363 = scmp.le.s32.totalorder 1, %s21
      %p364 = scmp.lt.s32.totalorder %s21, 3
      %p365 = pnand %p363, %p364
      %p366 = pneg %p365
      // Predicated region
      $region65: #{tpu_custom_call.1} parent=5 // pred_check
        _
      $region66: #{tpu_custom_call.1} parent=5 // pred_check_branch
        %368 = sbr.rel (%p365) target = $region68
      $region67: #{tpu_custom_call.1} parent=5 // pred_region
        %s369 = ssub.s32 %s21, 1
        %p370 = scmp.lt.s32.totalorder %s26, 1
        %s371 = scalar_select %p370, %s26, 1
        %s372 = smul.addr %s371, 8
        %s373 = scalar_lea.vmem %s0, %s372
        %p374 = pneg %p47
        %p375 = pneg %p44
        %p376 = pneg %p68
        %p377 = pneg %p65
        %p378 = pneg %p89
        %p379 = pneg %p86
        %p380 = pneg %p110
        %p381 = pneg %p107
        %p382 = pneg %p131
        %p383 = pneg %p128
        %p384 = pneg %p152
        %p385 = pneg %p149
        %p386 = pneg %p173
        %p387 = pneg %p170
        %p388 = pneg %p194
        %p389 = pneg %p191
        %p390 = pneg %p215
        %p391 = pneg %p212
        %p392 = pneg %p236
        %p393 = pneg %p233
        %p394 = pneg %p257
        %p395 = pneg %p254
        %p396 = pneg %p278
        %p397 = pneg %p275
        %p398 = pneg %p304
        %p399 = pneg %p301
        %s400 = sand.u32 %s291, 1
        %s401 = scalar_lea.sflag [#allocation3], %s400
        %s402 = sand.u32 %s291, 1
        %s403 = smul.addr %s402, 8
        %s404 = scalar_lea.vmem [#allocation2], %s403
        %p405 = scmp.lt.s32.totalorder %s26, 1
        %s406 = scalar_select %p405, %s26, 1
        %s407 = smul.addr %s406, 8
        %s408 = scalar_lea.vmem %s0, %s407
        %v410 = vld [vmem:[%s408] sm:$0xff]
        %v411 = vld [vmem:[%s4] sm:$0x1]
        %v412 = vld [vmem:[%s5] sm:$0x1]
        %vm413 = vcmask 261120
        %v414 = vsel %vm413, %v410, 0.0
        %415 = vadd.xlane.f32.xlu0 %v414
        %v416 = vpop.xlane.xlu0 %415
        %v417 = vrcp.pop 32.0
        %v418 = vmul.f32 %v416, %v417
        %v419 = vsub.f32 %v410, %v418
        %v420 = vmul.f32 %v419, %v419
        %v421 = vsel %vm413, %v420, 0.0
        %422 = vadd.xlane.f32.xlu0 %v421
        %v423 = vpop.xlane.xlu0 %422
        %v424 = vmul.f32 %v423, %v417
        %v425 = vadd.f32 %v424, 1e-05
        %v426 = vrsqrt.pop %v425
        %v427 = vmul.f32 %v419, %v426
        %v429 = vlaneseq
        %v430 = vshrl.u32 %v429, 7
        %v431 = vsub.s32 0, %v430
        %v432 = vrot.slane %v411, %v431
        %v434 = vmul.f32 %v432, %v427
        %v436 = vlaneseq
        %v437 = vshrl.u32 %v436, 7
        %v438 = vsub.s32 0, %v437
        %v439 = vrot.slane %v412, %v438
        %v441 = vadd.f32 %v434, %v439
        %v442 = vpack.c.bf16 %v441, %v441
        %v443 = vld [vmem:[%s1] sm:$0xf]
        %v444 = vld [vmem:[%s1 + $0x4] sm:$0xf]
        %v445 = vld [vmem:[%s1 + $0x8] sm:$0xf]
        %v446 = vld [vmem:[%s1 + $0xc] sm:$0xf]
        %v451 = vunpack.c.l.b16 %v443
        %v452 = vunpack.c.l.b16 %v444
        %v453 = vunpack.c.l.b16 %v445
        %v454 = vunpack.c.l.b16 %v446
        %v455 = vpack.c.b16 %v452, %v451
        %v456 = vpack.c.b16 %v454, %v453
        %v460 = vsel %vm413, %v442, 0
        %462 = vmatprep.subr.bf16.mxu0 0
        %463 = vmatpush1.bf16.msra.mxu0 0
        %464 = vmatprep.subr.bf16.mxu0 0
        %465 = vmatpush1.bf16.msra.mxu0 0
        %466 = vmatprep.subr.bf16.mxu0 0
        %467 = vmatpush1.bf16.msra.mxu0 0
        %468 = vmatprep.subr.bf16.mxu0 0
        %469 = vmatpush1.bf16.msra.mxu0 0
        %470 = vmatprep.subr.bf16.mxu0 0
        %471 = vmatpush1.bf16.msra.mxu0 0
        %472 = vmatprep.subr.bf16.mxu0 0
        %473 = vmatpush1.bf16.msra.mxu0 0
        %474 = vmatprep.subr.bf16.mxu0 0
        %475 = vmatpush1.bf16.msra.mxu0 %v456
        %476 = vmatprep.subr.bf16.mxu0 0
        %477 = vmatpush1.bf16.msra.mxu0 %v455
        %478 = vmatprep.subr.bf16.mxu0 0
        %479 = vmatpush2.bf16.msra.mxu0 0
        %480 = vmatprep.subr.bf16.mxu0 0
        %481 = vmatpush2.bf16.msra.mxu0 0
        %482 = vmatprep.subr.bf16.mxu0 0
        %483 = vmatpush2.bf16.msra.mxu0 0
        %484 = vmatprep.subr.bf16.mxu0 0
        %485 = vmatpush2.bf16.msra.mxu0 0
        %486 = vmatprep.subr.bf16.mxu0 0
        %487 = vmatpush2.bf16.msra.mxu0 0
        %488 = vmatprep.subr.bf16.mxu0 0
        %489 = vmatpush2.bf16.msra.mxu0 0
        %490 = vmatprep.subr.bf16.mxu0 0
        %491 = vmatpush2.bf16.msra.mxu0 0
        %492 = vmatprep.subr.bf16.mxu0 0
        %493 = vmatpush2.bf16.msra.mxu0 0
        %494 = vmatprep.mubr.bf16.mxu0 0
        %495 = vmatmul.mubr.bf16.gmra.mxu0 %v460
        %v496 = vpop.f32.mrf.mxu0
        %v497 = vadd.f32 0.0, %v496
        %v498 = vpop.f32.mrf.mxu0
        %v499 = vpop.f32.mrf.mxu0
        %v500 = vpop.f32.mrf.mxu0
        %501 = vdwg.mxu0
        %v502 = vmul.f32 %v497, 0.35355338
        %v503 = vpack.c.bf16 %v502, %v502
        %v504 = vpack.c.bf16 %v497, %v497
        %v505 = vlaneseq
        %v506 = vshrl.u32 %v505, 7
        %v507 = vlaneseq
        %v508 = vand.u32 %v507, 127
        %vm509 = vcmp.le.s32.totalorder %v508, %v506
        %v510 = vsel %vm509, 0.0, -1e+30
        %512 = vrot.lane.b32.xlu0 %v504, 96
        %v513 = vpop.permute.xlu0 %512
        %vm514 = vcmask 64512
        %v516 = vsel %vm514, %v503, 0
        %v519 = vsel %vm514, %v513, 0
        %521 = vmatprep.subr.bf16.mxu0 0
        %522 = vmatpush1.bf16.xpose.msra.mxu0 0
        %523 = vmatprep.subr.bf16.mxu0 0
        %524 = vmatpush1.bf16.xpose.msra.mxu0 0
        %525 = vmatprep.subr.bf16.mxu0 0
        %526 = vmatpush1.bf16.xpose.msra.mxu0 0
        %527 = vmatprep.subr.bf16.mxu0 0
        %528 = vmatpush1.bf16.xpose.msra.mxu0 0
        %529 = vmatprep.subr.bf16.mxu0 0
        %530 = vmatpush1.bf16.xpose.msra.mxu0 0
        %531 = vmatprep.subr.bf16.mxu0 0
        %532 = vmatpush1.bf16.xpose.msra.mxu0 0
        %533 = vmatprep.subr.bf16.mxu0 0
        %534 = vmatpush1.bf16.xpose.msra.mxu0 0
        %535 = vmatprep.subr.bf16.mxu0 0
        %536 = vmatpush1.bf16.xpose.msra.mxu0 %v519
        %537 = vmatprep.subr.bf16.mxu0 0
        %538 = vmatpush2.bf16.xpose.msra.mxu0 0
        %539 = vmatprep.subr.bf16.mxu0 0
        %540 = vmatpush2.bf16.xpose.msra.mxu0 0
        %541 = vmatprep.subr.bf16.mxu0 0
        %542 = vmatpush2.bf16.xpose.msra.mxu0 0
        %543 = vmatprep.subr.bf16.mxu0 0
        %544 = vmatpush2.bf16.xpose.msra.mxu0 0
        %545 = vmatprep.subr.bf16.mxu0 0
        %546 = vmatpush2.bf16.xpose.msra.mxu0 0
        %547 = vmatprep.subr.bf16.mxu0 0
        %548 = vmatpush2.bf16.xpose.msra.mxu0 0
        %549 = vmatprep.subr.bf16.mxu0 0
        %550 = vmatpush2.bf16.xpose.msra.mxu0 0
        %551 = vmatprep.subr.bf16.mxu0 0
        %552 = vmatpush2.bf16.xpose.msra.mxu0 0
        %553 = vmatprep.mubr.bf16.mxu0 0
        %554 = vmatmul.mubr.bf16.gmra.mxu0 %v516
        %v555 = vpop.f32.mrf.mxu0
        %v556 = vadd.f32 %v510, %v555
        %v557 = vpop.f32.mrf.mxu0
        %v558 = vpop.f32.mrf.mxu0
        %v559 = vpop.f32.mrf.mxu0
        %560 = vdwg.mxu0
        %v561 = vsel %vm514, %v556, -inf
        %562 = vmax.xlane.f32.xlu0 %v561
        %v563 = vpop.xlane.xlu0 %562
        %v564 = vsub.f32 %v556, %v563
        %v565 = vmul.f32 %v564, 1.442695
        %v566 = vpow.pop %v565
        %v567 = vsel %vm514, %v566, 0.0
        %568 = vadd.xlane.f32.xlu0 %v567
        %v569 = vpop.xlane.xlu0 %568
        %v570 = vrcp.pop %v569
        %v571 = vmul.f32 %v566, %v570
        %v572 = vpack.c.bf16 %v571, %v571
        %573 = vrot.lane.b32.xlu0 %v504, 64
        %v574 = vpop.permute.xlu0 %573
        %v576 = vsel %vm514, %v572, 0
        %vm578 = vcmask 1043456
        %v580 = vsel %vm578, %v574, 0
        %582 = vmatprep.subr.bf16.mxu0 0
        %583 = vmatpush1.bf16.msra.mxu0 0
        %584 = vmatprep.subr.bf16.mxu0 0
        %585 = vmatpush1.bf16.msra.mxu0 0
        %586 = vmatprep.subr.bf16.mxu0 0
        %587 = vmatpush1.bf16.msra.mxu0 0
        %588 = vmatprep.subr.bf16.mxu0 0
        %589 = vmatpush1.bf16.msra.mxu0 0
        %590 = vmatprep.subr.bf16.mxu0 0
        %591 = vmatpush1.bf16.msra.mxu0 0
        %592 = vmatprep.subr.bf16.mxu0 0
        %593 = vmatpush1.bf16.msra.mxu0 0
        %594 = vmatprep.subr.bf16.mxu0 0
        %595 = vmatpush1.bf16.msra.mxu0 0
        %596 = vmatprep.subr.bf16.mxu0 0
        %597 = vmatpush1.bf16.msra.mxu0 %v580
        %598 = vmatprep.subr.bf16.mxu0 0
        %599 = vmatpush2.bf16.msra.mxu0 0
        %600 = vmatprep.subr.bf16.mxu0 0
        %601 = vmatpush2.bf16.msra.mxu0 0
        %602 = vmatprep.subr.bf16.mxu0 0
        %603 = vmatpush2.bf16.msra.mxu0 0
        %604 = vmatprep.subr.bf16.mxu0 0
        %605 = vmatpush2.bf16.msra.mxu0 0
        %606 = vmatprep.subr.bf16.mxu0 0
        %607 = vmatpush2.bf16.msra.mxu0 0
        %608 = vmatprep.subr.bf16.mxu0 0
        %609 = vmatpush2.bf16.msra.mxu0 0
        %610 = vmatprep.subr.bf16.mxu0 0
        %611 = vmatpush2.bf16.msra.mxu0 0
        %612 = vmatprep.subr.bf16.mxu0 0
        %613 = vmatpush2.bf16.msra.mxu0 0
        %614 = vmatprep.mubr.bf16.mxu0 0
        %615 = vmatmul.mubr.bf16.gmra.mxu0 %v576
        %v616 = vpop.f32.mrf.mxu0
        %v617 = vadd.f32 0.0, %v616
        %v618 = vpop.f32.mrf.mxu0
        %v619 = vpop.f32.mrf.mxu0
        %v620 = vpop.f32.mrf.mxu0
        %621 = vdwg.mxu0
        %v622 = vpack.c.bf16 %v617, %v617
        %624 = vrot.lane.b32.xlu0 %v503, 120
        %v625 = vpop.permute.xlu0 %624
        %626 = vrot.lane.b32.xlu0 %v504, 88
        %v627 = vpop.permute.xlu0 %626
        %v629 = vsel %vm514, %v625, 0
        %v632 = vsel %vm514, %v627, 0
        %634 = vmatprep.subr.bf16.mxu0 0
        %635 = vmatpush1.bf16.xpose.msra.mxu0 0
        %636 = vmatprep.subr.bf16.mxu0 0
        %637 = vmatpush1.bf16.xpose.msra.mxu0 0
        %638 = vmatprep.subr.bf16.mxu0 0
        %639 = vmatpush1.bf16.xpose.msra.mxu0 0
        %640 = vmatprep.subr.bf16.mxu0 0
        %641 = vmatpush1.bf16.xpose.msra.mxu0 0
        %642 = vmatprep.subr.bf16.mxu0 0
        %643 = vmatpush1.bf16.xpose.msra.mxu0 0
        %644 = vmatprep.subr.bf16.mxu0 0
        %645 = vmatpush1.bf16.xpose.msra.mxu0 0
        %646 = vmatprep.subr.bf16.mxu0 0
        %647 = vmatpush1.bf16.xpose.msra.mxu0 0
        %648 = vmatprep.subr.bf16.mxu0 0
        %649 = vmatpush1.bf16.xpose.msra.mxu0 %v632
        %650 = vmatprep.subr.bf16.mxu0 0
        %651 = vmatpush2.bf16.xpose.msra.mxu0 0
        %652 = vmatprep.subr.bf16.mxu0 0
        %653 = vmatpush2.bf16.xpose.msra.mxu0 0
        %654 = vmatprep.subr.bf16.mxu0 0
        %655 = vmatpush2.bf16.xpose.msra.mxu0 0
        %656 = vmatprep.subr.bf16.mxu0 0
        %657 = vmatpush2.bf16.xpose.msra.mxu0 0
        %658 = vmatprep.subr.bf16.mxu0 0
        %659 = vmatpush2.bf16.xpose.msra.mxu0 0
        %660 = vmatprep.subr.bf16.mxu0 0
        %661 = vmatpush2.bf16.xpose.msra.mxu0 0
        %662 = vmatprep.subr.bf16.mxu0 0
        %663 = vmatpush2.bf16.xpose.msra.mxu0 0
        %664 = vmatprep.subr.bf16.mxu0 0
        %665 = vmatpush2.bf16.xpose.msra.mxu0 0
        %666 = vmatprep.mubr.bf16.mxu0 0
        %667 = vmatmul.mubr.bf16.gmra.mxu0 %v629
        %v668 = vpop.f32.mrf.mxu0
        %v669 = vadd.f32 %v510, %v668
        %v670 = vpop.f32.mrf.mxu0
        %v671 = vpop.f32.mrf.mxu0
        %v672 = vpop.f32.mrf.mxu0
        %673 = vdwg.mxu0
        %v674 = vsel %vm514, %v669, -inf
        %675 = vmax.xlane.f32.xlu0 %v674
        %v676 = vpop.xlane.xlu0 %675
        %v677 = vsub.f32 %v669, %v676
        %v678 = vmul.f32 %v677, 1.442695
        %v679 = vpow.pop %v678
        %v680 = vsel %vm514, %v679, 0.0
        %681 = vadd.xlane.f32.xlu0 %v680
        %v682 = vpop.xlane.xlu0 %681
        %v683 = vrcp.pop %v682
        %v684 = vmul.f32 %v679, %v683
        %v685 = vpack.c.bf16 %v684, %v684
        %686 = vrot.lane.b32.xlu0 %v504, 56
        %v687 = vpop.permute.xlu0 %686
        %v689 = vsel %vm514, %v685, 0
        %v692 = vsel %vm578, %v687, 0
        %694 = vmatprep.subr.bf16.mxu0 0
        %695 = vmatpush1.bf16.msra.mxu0 0
        %696 = vmatprep.subr.bf16.mxu0 0
        %697 = vmatpush1.bf16.msra.mxu0 0
        %698 = vmatprep.subr.bf16.mxu0 0
        %699 = vmatpush1.bf16.msra.mxu0 0
        %700 = vmatprep.subr.bf16.mxu0 0
        %701 = vmatpush1.bf16.msra.mxu0 0
        %702 = vmatprep.subr.bf16.mxu0 0
        %703 = vmatpush1.bf16.msra.mxu0 0
        %704 = vmatprep.subr.bf16.mxu0 0
        %705 = vmatpush1.bf16.msra.mxu0 0
        %706 = vmatprep.subr.bf16.mxu0 0
        %707 = vmatpush1.bf16.msra.mxu0 0
        %708 = vmatprep.subr.bf16.mxu0 0
        %709 = vmatpush1.bf16.msra.mxu0 %v692
        %710 = vmatprep.subr.bf16.mxu0 0
        %711 = vmatpush2.bf16.msra.mxu0 0
        %712 = vmatprep.subr.bf16.mxu0 0
        %713 = vmatpush2.bf16.msra.mxu0 0
        %714 = vmatprep.subr.bf16.mxu0 0
        %715 = vmatpush2.bf16.msra.mxu0 0
        %716 = vmatprep.subr.bf16.mxu0 0
        %717 = vmatpush2.bf16.msra.mxu0 0
        %718 = vmatprep.subr.bf16.mxu0 0
        %719 = vmatpush2.bf16.msra.mxu0 0
        %720 = vmatprep.subr.bf16.mxu0 0
        %721 = vmatpush2.bf16.msra.mxu0 0
        %722 = vmatprep.subr.bf16.mxu0 0
        %723 = vmatpush2.bf16.msra.mxu0 0
        %724 = vmatprep.subr.bf16.mxu0 0
        %725 = vmatpush2.bf16.msra.mxu0 0
        %726 = vmatprep.mubr.bf16.mxu0 0
        %727 = vmatmul.mubr.bf16.gmra.mxu0 %v689
        %v728 = vpop.f32.mrf.mxu0
        %v729 = vadd.f32 0.0, %v728
        %v730 = vpop.f32.mrf.mxu0
        %v731 = vpop.f32.mrf.mxu0
        %v732 = vpop.f32.mrf.mxu0
        %733 = vdwg.mxu0
        %v734 = vpack.c.bf16 %v729, %v729
        %735 = vrot.lane.b32.xlu0 %v503, 112
        %v736 = vpop.permute.xlu0 %735
        %737 = vrot.lane.b32.xlu0 %v504, 80
        %v738 = vpop.permute.xlu0 %737
        %v740 = vsel %vm514, %v736, 0
        %v743 = vsel %vm514, %v738, 0
        %745 = vmatprep.subr.bf16.mxu0 0
        %746 = vmatpush1.bf16.xpose.msra.mxu0 0
        %747 = vmatprep.subr.bf16.mxu0 0
        %748 = vmatpush1.bf16.xpose.msra.mxu0 0
        %749 = vmatprep.subr.bf16.mxu0 0
        %750 = vmatpush1.bf16.xpose.msra.mxu0 0
        %751 = vmatprep.subr.bf16.mxu0 0
        %752 = vmatpush1.bf16.xpose.msra.mxu0 0
        %753 = vmatprep.subr.bf16.mxu0 0
        %754 = vmatpush1.bf16.xpose.msra.mxu0 0
        %755 = vmatprep.subr.bf16.mxu0 0
        %756 = vmatpush1.bf16.xpose.msra.mxu0 0
        %757 = vmatprep.subr.bf16.mxu0 0
        %758 = vmatpush1.bf16.xpose.msra.mxu0 0
        %759 = vmatprep.subr.bf16.mxu0 0
        %760 = vmatpush1.bf16.xpose.msra.mxu0 %v743
        %761 = vmatprep.subr.bf16.mxu0 0
        %762 = vmatpush2.bf16.xpose.msra.mxu0 0
        %763 = vmatprep.subr.bf16.mxu0 0
        %764 = vmatpush2.bf16.xpose.msra.mxu0 0
        %765 = vmatprep.subr.bf16.mxu0 0
        %766 = vmatpush2.bf16.xpose.msra.mxu0 0
        %767 = vmatprep.subr.bf16.mxu0 0
        %768 = vmatpush2.bf16.xpose.msra.mxu0 0
        %769 = vmatprep.subr.bf16.mxu0 0
        %770 = vmatpush2.bf16.xpose.msra.mxu0 0
        %771 = vmatprep.subr.bf16.mxu0 0
        %772 = vmatpush2.bf16.xpose.msra.mxu0 0
        %773 = vmatprep.subr.bf16.mxu0 0
        %774 = vmatpush2.bf16.xpose.msra.mxu0 0
        %775 = vmatprep.subr.bf16.mxu0 0
        %776 = vmatpush2.bf16.xpose.msra.mxu0 0
        %777 = vmatprep.mubr.bf16.mxu0 0
        %778 = vmatmul.mubr.bf16.gmra.mxu0 %v740
        %v779 = vpop.f32.mrf.mxu0
        %v780 = vadd.f32 %v510, %v779
        %v781 = vpop.f32.mrf.mxu0
        %v782 = vpop.f32.mrf.mxu0
        %v783 = vpop.f32.mrf.mxu0
        %784 = vdwg.mxu0
        %v785 = vsel %vm514, %v780, -inf
        %786 = vmax.xlane.f32.xlu0 %v785
        %v787 = vpop.xlane.xlu0 %786
        %v788 = vsub.f32 %v780, %v787
        %v789 = vmul.f32 %v788, 1.442695
        %v790 = vpow.pop %v789
        %v791 = vsel %vm514, %v790, 0.0
        %792 = vadd.xlane.f32.xlu0 %v791
        %v793 = vpop.xlane.xlu0 %792
        %v794 = vrcp.pop %v793
        %v795 = vmul.f32 %v790, %v794
        %v796 = vpack.c.bf16 %v795, %v795
        %797 = vrot.lane.b32.xlu0 %v504, 48
        %v798 = vpop.permute.xlu0 %797
        %v800 = vsel %vm514, %v796, 0
        %v803 = vsel %vm578, %v798, 0
        %805 = vmatprep.subr.bf16.mxu0 0
        %806 = vmatpush1.bf16.msra.mxu0 0
        %807 = vmatprep.subr.bf16.mxu0 0
        %808 = vmatpush1.bf16.msra.mxu0 0
        %809 = vmatprep.subr.bf16.mxu0 0
        %810 = vmatpush1.bf16.msra.mxu0 0
        %811 = vmatprep.subr.bf16.mxu0 0
        %812 = vmatpush1.bf16.msra.mxu0 0
        %813 = vmatprep.subr.bf16.mxu0 0
        %814 = vmatpush1.bf16.msra.mxu0 0
        %815 = vmatprep.subr.bf16.mxu0 0
        %816 = vmatpush1.bf16.msra.mxu0 0
        %817 = vmatprep.subr.bf16.mxu0 0
        %818 = vmatpush1.bf16.msra.mxu0 0
        %819 = vmatprep.subr.bf16.mxu0 0
        %820 = vmatpush1.bf16.msra.mxu0 %v803
        %821 = vmatprep.subr.bf16.mxu0 0
        %822 = vmatpush2.bf16.msra.mxu0 0
        %823 = vmatprep.subr.bf16.mxu0 0
        %824 = vmatpush2.bf16.msra.mxu0 0
        %825 = vmatprep.subr.bf16.mxu0 0
        %826 = vmatpush2.bf16.msra.mxu0 0
        %827 = vmatprep.subr.bf16.mxu0 0
        %828 = vmatpush2.bf16.msra.mxu0 0
        %829 = vmatprep.subr.bf16.mxu0 0
        %830 = vmatpush2.bf16.msra.mxu0 0
        %831 = vmatprep.subr.bf16.mxu0 0
        %832 = vmatpush2.bf16.msra.mxu0 0
        %833 = vmatprep.subr.bf16.mxu0 0
        %834 = vmatpush2.bf16.msra.mxu0 0
        %835 = vmatprep.subr.bf16.mxu0 0
        %836 = vmatpush2.bf16.msra.mxu0 0
        %837 = vmatprep.mubr.bf16.mxu0 0
        %838 = vmatmul.mubr.bf16.gmra.mxu0 %v800
        %v839 = vpop.f32.mrf.mxu0
        %v840 = vadd.f32 0.0, %v839
        %v841 = vpop.f32.mrf.mxu0
        %v842 = vpop.f32.mrf.mxu0
        %v843 = vpop.f32.mrf.mxu0
        %844 = vdwg.mxu0
        %v845 = vpack.c.bf16 %v840, %v840
        %846 = vrot.lane.b32.xlu0 %v503, 104
        %v847 = vpop.permute.xlu0 %846
        %848 = vrot.lane.b32.xlu0 %v504, 72
        %v849 = vpop.permute.xlu0 %848
        %v851 = vsel %vm514, %v847, 0
        %v854 = vsel %vm514, %v849, 0
        %856 = vmatprep.subr.bf16.mxu0 0
        %857 = vmatpush1.bf16.xpose.msra.mxu0 0
        %858 = vmatprep.subr.bf16.mxu0 0
        %859 = vmatpush1.bf16.xpose.msra.mxu0 0
        %860 = vmatprep.subr.bf16.mxu0 0
        %861 = vmatpush1.bf16.xpose.msra.mxu0 0
        %862 = vmatprep.subr.bf16.mxu0 0
        %863 = vmatpush1.bf16.xpose.msra.mxu0 0
        %864 = vmatprep.subr.bf16.mxu0 0
        %865 = vmatpush1.bf16.xpose.msra.mxu0 0
        %866 = vmatprep.subr.bf16.mxu0 0
        %867 = vmatpush1.bf16.xpose.msra.mxu0 0
        %868 = vmatprep.subr.bf16.mxu0 0
        %869 = vmatpush1.bf16.xpose.msra.mxu0 0
        %870 = vmatprep.subr.bf16.mxu0 0
        %871 = vmatpush1.bf16.xpose.msra.mxu0 %v854
        %872 = vmatprep.subr.bf16.mxu0 0
        %873 = vmatpush2.bf16.xpose.msra.mxu0 0
        %874 = vmatprep.subr.bf16.mxu0 0
        %875 = vmatpush2.bf16.xpose.msra.mxu0 0
        %876 = vmatprep.subr.bf16.mxu0 0
        %877 = vmatpush2.bf16.xpose.msra.mxu0 0
        %878 = vmatprep.subr.bf16.mxu0 0
        %879 = vmatpush2.bf16.xpose.msra.mxu0 0
        %880 = vmatprep.subr.bf16.mxu0 0
        %881 = vmatpush2.bf16.xpose.msra.mxu0 0
        %882 = vmatprep.subr.bf16.mxu0 0
        %883 = vmatpush2.bf16.xpose.msra.mxu0 0
        %884 = vmatprep.subr.bf16.mxu0 0
        %885 = vmatpush2.bf16.xpose.msra.mxu0 0
        %886 = vmatprep.subr.bf16.mxu0 0
        %887 = vmatpush2.bf16.xpose.msra.mxu0 0
        %888 = vmatprep.mubr.bf16.mxu0 0
        %889 = vmatmul.mubr.bf16.gmra.mxu0 %v851
        %v890 = vpop.f32.mrf.mxu0
        %v891 = vadd.f32 %v510, %v890
        %v892 = vpop.f32.mrf.mxu0
        %v893 = vpop.f32.mrf.mxu0
        %v894 = vpop.f32.mrf.mxu0
        %895 = vdwg.mxu0
        %v896 = vsel %vm514, %v891, -inf
        %897 = vmax.xlane.f32.xlu0 %v896
        %v898 = vpop.xlane.xlu0 %897
        %v899 = vsub.f32 %v891, %v898
        %v900 = vmul.f32 %v899, 1.442695
        %v901 = vpow.pop %v900
        %v902 = vsel %vm514, %v901, 0.0
        %903 = vadd.xlane.f32.xlu0 %v902
        %v904 = vpop.xlane.xlu0 %903
        %v905 = vrcp.pop %v904
        %v906 = vmul.f32 %v901, %v905
        %v907 = vpack.c.bf16 %v906, %v906
        %908 = vrot.lane.b32.xlu0 %v504, 40
        %v909 = vpop.permute.xlu0 %908
        %v911 = vsel %vm514, %v907, 0
        %v914 = vsel %vm578, %v909, 0
        %916 = vmatprep.subr.bf16.mxu0 0
        %917 = vmatpush1.bf16.msra.mxu0 0
        %918 = vmatprep.subr.bf16.mxu0 0
        %919 = vmatpush1.bf16.msra.mxu0 0
        %920 = vmatprep.subr.bf16.mxu0 0
        %921 = vmatpush1.bf16.msra.mxu0 0
        %922 = vmatprep.subr.bf16.mxu0 0
        %923 = vmatpush1.bf16.msra.mxu0 0
        %924 = vmatprep.subr.bf16.mxu0 0
        %925 = vmatpush1.bf16.msra.mxu0 0
        %926 = vmatprep.subr.bf16.mxu0 0
        %927 = vmatpush1.bf16.msra.mxu0 0
        %928 = vmatprep.subr.bf16.mxu0 0
        %929 = vmatpush1.bf16.msra.mxu0 0
        %930 = vmatprep.subr.bf16.mxu0 0
        %931 = vmatpush1.bf16.msra.mxu0 %v914
        %932 = vmatprep.subr.bf16.mxu0 0
        %933 = vmatpush2.bf16.msra.mxu0 0
        %934 = vmatprep.subr.bf16.mxu0 0
        %935 = vmatpush2.bf16.msra.mxu0 0
        %936 = vmatprep.subr.bf16.mxu0 0
        %937 = vmatpush2.bf16.msra.mxu0 0
        %938 = vmatprep.subr.bf16.mxu0 0
        %939 = vmatpush2.bf16.msra.mxu0 0
        %940 = vmatprep.subr.bf16.mxu0 0
        %941 = vmatpush2.bf16.msra.mxu0 0
        %942 = vmatprep.subr.bf16.mxu0 0
        %943 = vmatpush2.bf16.msra.mxu0 0
        %944 = vmatprep.subr.bf16.mxu0 0
        %945 = vmatpush2.bf16.msra.mxu0 0
        %946 = vmatprep.subr.bf16.mxu0 0
        %947 = vmatpush2.bf16.msra.mxu0 0
        %948 = vmatprep.mubr.bf16.mxu0 0
        %949 = vmatmul.mubr.bf16.gmra.mxu0 %v911
        %v950 = vpop.f32.mrf.mxu0
        %v951 = vadd.f32 0.0, %v950
        %v952 = vpop.f32.mrf.mxu0
        %v953 = vpop.f32.mrf.mxu0
        %v954 = vpop.f32.mrf.mxu0
        %955 = vdwg.mxu0
        %v956 = vpack.c.bf16 %v951, %v951
        %958 = vrot.lane.b32.xlu0 %v734, 8
        %v959 = vpop.permute.xlu0 %958
        %961 = vrot.lane.b32.xlu0 %v845, 16
        %v962 = vpop.permute.xlu0 %961
        %964 = vrot.lane.b32.xlu0 %v956, 24
        %v965 = vpop.permute.xlu0 %964
        %v968 = vsel %vm514, %v622, %v959
        %vm969 = vcmask 130048
        %v971 = vsel %vm969, %v968, %v962
        %vm972 = vcmask 195584
        %v974 = vsel %vm972, %v971, %v965
        %v975 = vld [vmem:[%s2] sm:$0xf]
        %v976 = vld [vmem:[%s2 + $0x4] sm:$0xf]
        %v977 = vld [vmem:[%s2 + $0x8] sm:$0xf]
        %v978 = vld [vmem:[%s2 + $0xc] sm:$0xf]
        %v979 = vld [vmem:[%s3] sm:$0x1]
        %v981 = vlaneseq
        %v982 = vshrl.u32 %v981, 7
        %v983 = vsub.s32 0, %v982
        %v984 = vrot.slane %v979, %v983
        %v990 = vunpack.c.l.b16 %v975
        %v991 = vunpack.c.l.b16 %v976
        %v992 = vunpack.c.l.b16 %v977
        %v993 = vunpack.c.l.b16 %v978
        %v994 = vpack.c.b16 %v991, %v990
        %v995 = vpack.c.b16 %v993, %v992
        %v998 = vsel %vm413, %v974, 0
        %1000 = vmatprep.subr.bf16.mxu0 0
        %1001 = vmatpush1.bf16.msra.mxu0 0
        %1002 = vmatprep.subr.bf16.mxu0 0
        %1003 = vmatpush1.bf16.msra.mxu0 0
        %1004 = vmatprep.subr.bf16.mxu0 0
        %1005 = vmatpush1.bf16.msra.mxu0 0
        %1006 = vmatprep.subr.bf16.mxu0 0
        %1007 = vmatpush1.bf16.msra.mxu0 0
        %1008 = vmatprep.subr.bf16.mxu0 0
        %1009 = vmatpush1.bf16.msra.mxu0 0
        %1010 = vmatprep.subr.bf16.mxu0 0
        %1011 = vmatpush1.bf16.msra.mxu0 0
        %1012 = vmatprep.subr.bf16.mxu0 0
        %1013 = vmatpush1.bf16.msra.mxu0 %v995
        %1014 = vmatprep.subr.bf16.mxu0 0
        %1015 = vmatpush1.bf16.msra.mxu0 %v994
        %1016 = vmatprep.subr.bf16.mxu0 0
        %1017 = vmatpush2.bf16.msra.mxu0 0
        %1018 = vmatprep.subr.bf16.mxu0 0
        %1019 = vmatpush2.bf16.msra.mxu0 0
        %1020 = vmatprep.subr.bf16.mxu0 0
        %1021 = vmatpush2.bf16.msra.mxu0 0
        %1022 = vmatprep.subr.bf16.mxu0 0
        %1023 = vmatpush2.bf16.msra.mxu0 0
        %1024 = vmatprep.subr.bf16.mxu0 0
        %1025 = vmatpush2.bf16.msra.mxu0 0
        %1026 = vmatprep.subr.bf16.mxu0 0
        %1027 = vmatpush2.bf16.msra.mxu0 0
        %1028 = vmatprep.subr.bf16.mxu0 0
        %1029 = vmatpush2.bf16.msra.mxu0 0
        %1030 = vmatprep.subr.bf16.mxu0 0
        %1031 = vmatpush2.bf16.msra.mxu0 0
        %1032 = vmatprep.mubr.bf16.mxu0 0
        %1033 = vmatmul.mubr.bf16.gmra.mxu0 %v998
        %v1034 = vpop.f32.mrf.mxu0
        %v1035 = vadd.f32 %v984, %v1034
        %v1036 = vpop.f32.mrf.mxu0
        %v1037 = vpop.f32.mrf.mxu0
        %v1038 = vpop.f32.mrf.mxu0
        %1039 = vdwg.mxu0
        %v1040 = vadd.f32 %v410, %v1035
        %v1041 = vld [vmem:[%s10] sm:$0x1]
        %v1042 = vld [vmem:[%s11] sm:$0x1]
        %v1043 = vsel %vm413, %v1040, 0.0
        %1044 = vadd.xlane.f32.xlu0 %v1043
        %v1045 = vpop.xlane.xlu0 %1044
        %v1046 = vmul.f32 %v1045, %v417
        %v1047 = vsub.f32 %v1040, %v1046
        %v1048 = vmul.f32 %v1047, %v1047
        %v1049 = vsel %vm413, %v1048, 0.0
        %1050 = vadd.xlane.f32.xlu0 %v1049
        %v1051 = vpop.xlane.xlu0 %1050
        %v1052 = vmul.f32 %v1051, %v417
        %v1053 = vadd.f32 %v1052, 1e-05
        %v1054 = vrsqrt.pop %v1053
        %v1055 = vmul.f32 %v1047, %v1054
        %v1057 = vlaneseq
        %v1058 = vshrl.u32 %v1057, 7
        %v1059 = vsub.s32 0, %v1058
        %v1060 = vrot.slane %v1041, %v1059
        %v1062 = vmul.f32 %v1060, %v1055
        %v1064 = vlaneseq
        %v1065 = vshrl.u32 %v1064, 7
        %v1066 = vsub.s32 0, %v1065
        %v1067 = vrot.slane %v1042, %v1066
        %v1069 = vadd.f32 %v1062, %v1067
        %v1070 = vpack.c.bf16 %v1069, %v1069
        %v1071 = vld [vmem:[%s6] sm:$0xf]
        %v1072 = vld [vmem:[%s6 + $0x4] sm:$0xf]
        %v1073 = vld [vmem:[%s6 + $0x8] sm:$0xf]
        %v1074 = vld [vmem:[%s6 + $0xc] sm:$0xf]
        %v1075 = vld [vmem:[%s7] sm:$0x1]
        %v1077 = vlaneseq
        %v1078 = vshrl.u32 %v1077, 7
        %v1079 = vsub.s32 0, %v1078
        %v1080 = vrot.slane %v1075, %v1079
        %v1086 = vunpack.c.l.b16 %v1071
        %v1087 = vunpack.c.l.b16 %v1072
        %v1088 = vunpack.c.l.b16 %v1073
        %v1089 = vunpack.c.l.b16 %v1074
        %v1090 = vpack.c.b16 %v1087, %v1086
        %v1091 = vpack.c.b16 %v1089, %v1088
        %v1095 = vsel %vm413, %v1070, 0
        %1097 = vmatprep.subr.bf16.mxu0 0
        %1098 = vmatpush1.bf16.msra.mxu0 0
        %1099 = vmatprep.subr.bf16.mxu0 0
        %1100 = vmatpush1.bf16.msra.mxu0 0
        %1101 = vmatprep.subr.bf16.mxu0 0
        %1102 = vmatpush1.bf16.msra.mxu0 0
        %1103 = vmatprep.subr.bf16.mxu0 0
        %1104 = vmatpush1.bf16.msra.mxu0 0
        %1105 = vmatprep.subr.bf16.mxu0 0
        %1106 = vmatpush1.bf16.msra.mxu0 0
        %1107 = vmatprep.subr.bf16.mxu0 0
        %1108 = vmatpush1.bf16.msra.mxu0 0
        %1109 = vmatprep.subr.bf16.mxu0 0
        %1110 = vmatpush1.bf16.msra.mxu0 %v1091
        %1111 = vmatprep.subr.bf16.mxu0 0
        %1112 = vmatpush1.bf16.msra.mxu0 %v1090
        %1113 = vmatprep.subr.bf16.mxu0 0
        %1114 = vmatpush2.bf16.msra.mxu0 0
        %1115 = vmatprep.subr.bf16.mxu0 0
        %1116 = vmatpush2.bf16.msra.mxu0 0
        %1117 = vmatprep.subr.bf16.mxu0 0
        %1118 = vmatpush2.bf16.msra.mxu0 0
        %1119 = vmatprep.subr.bf16.mxu0 0
        %1120 = vmatpush2.bf16.msra.mxu0 0
        %1121 = vmatprep.subr.bf16.mxu0 0
        %1122 = vmatpush2.bf16.msra.mxu0 0
        %1123 = vmatprep.subr.bf16.mxu0 0
        %1124 = vmatpush2.bf16.msra.mxu0 0
        %1125 = vmatprep.subr.bf16.mxu0 0
        %1126 = vmatpush2.bf16.msra.mxu0 0
        %1127 = vmatprep.subr.bf16.mxu0 0
        %1128 = vmatpush2.bf16.msra.mxu0 0
        %1129 = vmatprep.mubr.bf16.mxu0 0
        %1130 = vmatmul.mubr.bf16.gmra.mxu0 %v1095
        %v1131 = vpop.f32.mrf.mxu0
        %v1132 = vadd.f32 %v1080, %v1131
        %v1133 = vpop.f32.mrf.mxu0
        %v1134 = vpop.f32.mrf.mxu0
        %v1135 = vpop.f32.mrf.mxu0
        %1136 = vdwg.mxu0
        %v1137 = vmul.f32 %v1132, 0.5
        %v1138 = vmul.f32 %v1132, 0.044715
        %v1139 = vmul.f32 %v1138, %v1132
        %v1140 = vmul.f32 %v1139, %v1132
        %v1141 = vadd.f32 %v1132, %v1140
        %v1142 = vmul.f32 %v1141, 0.7978846
        %v1143 = vtanh.pop %v1142
        %v1144 = vadd.f32 %v1143, 1.0
        %v1145 = vmul.f32 %v1137, %v1144
        %v1146 = vpack.c.bf16 %v1145, %v1145
        %v1147 = vld [vmem:[%s8] sm:$0xf]
        %v1148 = vld [vmem:[%s8 + $0x4] sm:$0xf]
        %v1149 = vld [vmem:[%s8 + $0x8] sm:$0xf]
        %v1150 = vld [vmem:[%s8 + $0xc] sm:$0xf]
        %v1151 = vld [vmem:[%s8 + $0x10] sm:$0xf]
        %v1152 = vld [vmem:[%s8 + $0x14] sm:$0xf]
        %v1153 = vld [vmem:[%s8 + $0x18] sm:$0xf]
        %v1154 = vld [vmem:[%s8 + $0x1c] sm:$0xf]
        %v1155 = vld [vmem:[%s8 + $0x20] sm:$0xf]
        %v1156 = vld [vmem:[%s8 + $0x24] sm:$0xf]
        %v1157 = vld [vmem:[%s8 + $0x28] sm:$0xf]
        %v1158 = vld [vmem:[%s8 + $0x2c] sm:$0xf]
        %v1159 = vld [vmem:[%s8 + $0x30] sm:$0xf]
        %v1160 = vld [vmem:[%s8 + $0x34] sm:$0xf]
        %v1161 = vld [vmem:[%s8 + $0x38] sm:$0xf]
        %v1162 = vld [vmem:[%s8 + $0x3c] sm:$0xf]
        %v1163 = vld [vmem:[%s9] sm:$0x1]
        %v1165 = vlaneseq
        %v1166 = vshrl.u32 %v1165, 7
        %v1167 = vsub.s32 0, %v1166
        %v1168 = vrot.slane %v1163, %v1167
        %v1186 = vunpack.c.l.b16 %v1147
        %v1187 = vunpack.c.l.b16 %v1148
        %v1188 = vunpack.c.l.b16 %v1149
        %v1189 = vunpack.c.l.b16 %v1150
        %v1190 = vunpack.c.l.b16 %v1151
        %v1191 = vunpack.c.l.b16 %v1152
        %v1192 = vunpack.c.l.b16 %v1153
        %v1193 = vunpack.c.l.b16 %v1154
        %v1194 = vunpack.c.l.b16 %v1155
        %v1195 = vunpack.c.l.b16 %v1156
        %v1196 = vunpack.c.l.b16 %v1157
        %v1197 = vunpack.c.l.b16 %v1158
        %v1198 = vunpack.c.l.b16 %v1159
        %v1199 = vunpack.c.l.b16 %v1160
        %v1200 = vunpack.c.l.b16 %v1161
        %v1201 = vunpack.c.l.b16 %v1162
        %v1202 = vpack.c.b16 %v1187, %v1186
        %v1203 = vpack.c.b16 %v1189, %v1188
        %v1204 = vpack.c.b16 %v1191, %v1190
        %v1205 = vpack.c.b16 %v1193, %v1192
        %v1206 = vpack.c.b16 %v1195, %v1194
        %v1207 = vpack.c.b16 %v1197, %v1196
        %v1208 = vpack.c.b16 %v1199, %v1198
        %v1209 = vpack.c.b16 %v1201, %v1200
        %1218 = vmatprep.subr.bf16.mxu0 0
        %1219 = vmatpush1.bf16.msra.mxu0 %v1209
        %1220 = vmatprep.subr.bf16.mxu0 0
        %1221 = vmatpush1.bf16.msra.mxu0 %v1208
        %1222 = vmatprep.subr.bf16.mxu0 0
        %1223 = vmatpush1.bf16.msra.mxu0 %v1207
        %1224 = vmatprep.subr.bf16.mxu0 0
        %1225 = vmatpush1.bf16.msra.mxu0 %v1206
        %1226 = vmatprep.subr.bf16.mxu0 0
        %1227 = vmatpush1.bf16.msra.mxu0 %v1205
        %1228 = vmatprep.subr.bf16.mxu0 0
        %1229 = vmatpush1.bf16.msra.mxu0 %v1204
        %1230 = vmatprep.subr.bf16.mxu0 0
        %1231 = vmatpush1.bf16.msra.mxu0 %v1203
        %1232 = vmatprep.subr.bf16.mxu0 0
        %1233 = vmatpush1.bf16.msra.mxu0 %v1202
        %1234 = vmatprep.subr.bf16.mxu0 0
        %1235 = vmatpush2.bf16.msra.mxu0 0
        %1236 = vmatprep.subr.bf16.mxu0 0
        %1237 = vmatpush2.bf16.msra.mxu0 0
        %1238 = vmatprep.subr.bf16.mxu0 0
        %1239 = vmatpush2.bf16.msra.mxu0 0
        %1240 = vmatprep.subr.bf16.mxu0 0
        %1241 = vmatpush2.bf16.msra.mxu0 0
        %1242 = vmatprep.subr.bf16.mxu0 0
        %1243 = vmatpush2.bf16.msra.mxu0 0
        %1244 = vmatprep.subr.bf16.mxu0 0
        %1245 = vmatpush2.bf16.msra.mxu0 0
        %1246 = vmatprep.subr.bf16.mxu0 0
        %1247 = vmatpush2.bf16.msra.mxu0 0
        %1248 = vmatprep.subr.bf16.mxu0 0
        %1249 = vmatpush2.bf16.msra.mxu0 0
        %1250 = vmatprep.mubr.bf16.mxu0 0
        %1251 = vmatmul.mubr.bf16.gmra.mxu0 %v1146
        %v1252 = vpop.f32.mrf.mxu0
        %v1253 = vadd.f32 %v1168, %v1252
        %v1254 = vpop.f32.mrf.mxu0
        %v1255 = vpop.f32.mrf.mxu0
        %v1256 = vpop.f32.mrf.mxu0
        %1257 = vdwg.mxu0
        %v1258 = vadd.f32 %v1040, %v1253
        %1259 = vst.msk [vmem:[%s404] sm:$0xff] %vm413, %v1258
        %s1260 = sand.u32 %s291, 1
        %s1261 = scalar_lea.sflag [#allocation3], %s1260
        %s1262 = sand.u32 %s291, 1
        %s1263 = smul.addr %s1262, 8
        %s1264 = scalar_lea.vmem [#allocation2], %s1263
        // Predicated region
        $region69: #{tpu_custom_call.1} parent=67 // pred_check
          %p1265 = pneg %p301
        $region70: #{tpu_custom_call.1} parent=67 // pred_check_branch
          %1267 = sbr.rel (%p1265) target = $region72
        $region71: #{tpu_custom_call.1} parent=67 // pred_region
          %s1269 = ssub.s32 128, 128
          %1270 = vsyncadd %s1261, %s1269
          %s1271 = smul.addr %s26, 128
          %s1272 = scalar_lea.hbm %s12, %s1271
          %s1274 = sshll.u32 %s1264, 4
          %s1275 = int_to_ptr.vmem [resolvable:$true] %s1274
          %1277 = dma.vmem_to_hbm [thread:$0]  %s1275, 128, %s1272, %s1261
        $region72: #{tpu_custom_call.1} parent=67 // pred_fallthru
          _
      $region68: #{tpu_custom_call.1} parent=5 // pred_fallthru
        _
      %p1278 = scmp.le.s32.totalorder 2, %s21
      // Predicated region
      $region73: #{tpu_custom_call.1} parent=5 // pred_check
        %p1279 = pneg %p1278
      $region74: #{tpu_custom_call.1} parent=5 // pred_check_branch
        %1281 = sbr.rel (%p1279) target = $region76
      $region75: #{tpu_custom_call.1} parent=5 // pred_region
        %s1282 = ssub.s32 %s21, 2
        // Predicated region
        $region77: #{tpu_custom_call.1} parent=75 // pred_check
          %p1283 = pneg %p307
        $region78: #{tpu_custom_call.1} parent=75 // pred_check_branch
          %1285 = sbr.rel (%p1283) target = $region80
        $region79: #{tpu_custom_call.1} parent=75 // pred_region
          %s1286 = sand.u32 %s292, 1
          %s1287 = scalar_lea.sflag [#allocation3], %s1286
          %s1288 = sand.u32 %s292, 1
          %s1289 = smul.addr %s1288, 8
          %s1290 = scalar_lea.vmem [#allocation2], %s1289
          %1291 = dma.done %s1287, 128
        $region80: #{tpu_custom_call.1} parent=75 // pred_fallthru
          _
      $region76: #{tpu_custom_call.1} parent=5 // pred_fallthru
        _
    $region6: #{tpu_custom_call.1} parent=1 // loop_footer
      %s25 = sadd.s32 1, %s21
    $region7: #{tpu_custom_call.1} parent=1 // loop_footer_branch
      %20 = sbr.rel target = $region3
    $region8: #{tpu_custom_call.1} parent=1 // loop_exit
      _
    %1292 = vsyncpa [#allocation3], 1
    %s1293 = scalar_lea.sflag [#allocation3], 1
    %1294 = vsyncpa %s1293, 1

</llo_original>
